<compile_context>
chip_gen: v6e
topology: v6e:2x2x1
jax: 0.10.0
libtpu: 0.0.40
codegen_flags: <defaults>
</compile_context>

<pallas_src>
import functools

import jax
import jax.numpy as jnp
from jax.experimental import pallas as pl
from jax.experimental.pallas import tpu as pltpu


def _round_up(x, m):
    return (x + m - 1) // m * m


def _choose_th(H, W, Cin, Cp):
    """H-tile height: divides H, keeps VMEM bounded, leaves >=2 tiles when possible."""
    # ~bytes of conv-kernel VMEM per output row (slab + conv-out + f32 result + input)
    per_row = W * (9 * Cin * 2 + 2 * Cp * 2 + Cp * 4) + 2 * (W + 2) * Cin * 2
    max_rows = max(1, (24 << 20) // max(per_row, 1))
    target = min(max(8, 1024 // max(W, 1)), max(1, H // 2), max(1, max_rows // max(W, 1)))
    best = 1
    for d in range(1, H + 1):
        if H % d == 0 and d <= target:
            best = d
    return best


def _choose_tm(M):
    """Row tile for the memory-bound BN/ReLU pass (prefer big lane-dense tiles)."""
    for cand in (2048, 1024, 512, 256, 128):
        if M % cand == 0:
            return cand, M
    tm = min(2048, _round_up(M, 8))
    return tm, _round_up(M, tm)


# ---------------------------------------------------------------------------
# Kernel 1: 3x3 conv as a single big-K im2col matmul per H-tile
#           + per-tile per-channel (sum, sumsq) for BatchNorm statistics.
# ---------------------------------------------------------------------------
def _conv_stats_kernel(x_ref, w_ref, conv_ref, stats_ref, slab_ref, *, th, W, Cin):
    rows = th * W

    # Implicit im2col: pack the 9 shifted (rows, Cin) views into one VMEM slab
    # so the matmul runs as a single K = 9*Cin MXU dot (f32 accumulate).
    for dy in range(3):
        for dx in range(3):
            t = dy * 3 + dx
            v = x_ref[0, dy:dy + th, dx:dx + W, :].reshape(rows, Cin)  # bf16, no cast
            slab_ref[:, t * Cin:(t + 1) * Cin] = v

    acc = jnp.dot(slab_ref[...], w_ref[...], preferred_element_type=jnp.float32)

    conv_bf = acc.astype(conv_ref.dtype)
    conv_ref[0] = conv_bf

    # Partial BN stats, computed on the bf16-rounded values the second pass will
    # actually read back; written once as a compact (2, Cp) slab.
    a = conv_bf.astype(jnp.float32)
    s1 = jnp.sum(a, axis=0, keepdims=True)
    s2 = jnp.sum(a * a, axis=0, keepdims=True)
    stats_ref[0] = jnp.concatenate([s1, s2], axis=0)


# ---------------------------------------------------------------------------
# Kernel 2: folded BatchNorm (scale/shift FMA) + ReLU, unpadded Cout output.
# ---------------------------------------------------------------------------
def _bn_relu_kernel(x_ref, p_ref, o_ref, *, Cout):
    x = x_ref[...].astype(jnp.float32)
    y = jnp.maximum(x * p_ref[0:1, :] + p_ref[1:2, :], 0.0)
    o_ref[...] = y[:, :Cout]


# ---------------------------------------------------------------------------
# Wrapper: layout/padding glue in XLA, hot paths in Pallas.
# ---------------------------------------------------------------------------
@functools.partial(jax.jit, static_argnames=("eps",))
def unit_forward(x_nchw, w_conv, b_conv, gamma, beta, *, eps=1e-5):
    # Conv bias is exactly cancelled by training-mode BatchNorm (it only shifts
    # the batch mean), so it is dropped from the compute path.
    del b_conv

    N, Cin, H, W = x_nchw.shape
    Cout = w_conv.shape[0]
    Cp = 128 if Cout <= 128 else _round_up(Cout, 256)   # MXU-native N width (v6e/v7x)
    HW = H * W
    M = N * HW

    th = _choose_th(H, W, Cin, Cp)
    n_h = H // th
    rows = th * W
    Kc = 9 * Cin

    # --- input prep (XLA): NCHW -> NHWC, bf16, zero-pad, overlapping H tiles (+2 halo)
    x = jnp.transpose(x_nchw, (0, 2, 3, 1)).astype(jnp.bfloat16)
    xp = jnp.pad(x, ((0, 0), (1, 1), (1, 1), (0, 0)))
    row_idx = jnp.arange(n_h)[:, None] * th + jnp.arange(th + 2)[None, :]   # (n_h, th+2)
    x_tiles = xp[:, row_idx].reshape(N * n_h, th + 2, W + 2, Cin)

    # --- weights: [Cout, Cin, 3, 3] -> im2col layout (9*Cin, Cp), bf16
    w2 = jnp.transpose(w_conv, (2, 3, 1, 0)).reshape(Kc, Cout)
    w2 = jnp.pad(w2, ((0, 0), (0, Cp - Cout))).astype(jnp.bfloat16)

    # Explicit scoped-VMEM budget for the conv call (rough, layout-padded estimate).
    lane = lambda c: _round_up(c, 128)
    sub = lambda r: _round_up(r, 16)
    conv_need = (2 * ((th + 2) * sub(W + 2) * lane(Cin) * 2     # input tile   (x2 buf)
                      + sub(rows) * lane(Cp) * 2                # conv-out tile(x2 buf)
                      + 8 * lane(Cp) * 4                        # stats tile   (x2 buf)
                      + sub(Kc) * lane(Cp) * 2)                 # resident weights
                 + sub(rows) * lane(Kc) * 2                     # im2col slab scratch
                 + sub(rows) * lane(Cp) * 4)                    # f32 dot result
    conv_vmem = int(min(64 << 20, max(16 << 20, 2 * conv_need)))

    conv_out, stats = pl.pallas_call(
        functools.partial(_conv_stats_kernel, th=th, W=W, Cin=Cin),
        out_shape=(
            jax.ShapeDtypeStruct((N, HW, Cp), jnp.bfloat16),       # bf16 intermediate
            jax.ShapeDtypeStruct((N * n_h, 2, Cp), jnp.float32),   # per-tile stats
        ),
        grid_spec=pltpu.PrefetchScalarGridSpec(
            num_scalar_prefetch=0,
            grid=(N, n_h),
            in_specs=[
                pl.BlockSpec((1, th + 2, W + 2, Cin),
                             lambda n, h: (n * n_h + h, 0, 0, 0)),
                pl.BlockSpec((Kc, Cp), lambda n, h: (0, 0)),        # resident weight
            ],
            out_specs=(
                pl.BlockSpec((1, rows, Cp), lambda n, h: (n, h, 0)),
                pl.BlockSpec((1, 2, Cp), lambda n, h: (n * n_h + h, 0, 0)),
            ),
            scratch_shapes=[pltpu.VMEM((rows, Kc), jnp.bfloat16)],  # im2col slab
        ),
        compiler_params=pltpu.CompilerParams(
            dimension_semantics=("parallel", "parallel"),
            vmem_limit_bytes=conv_vmem),
    )(x_tiles, w2)

    # Combine per-tile partial stats; training-mode (biased) BatchNorm statistics.
    s1 = jnp.sum(stats[:, 0, :], axis=0)
    s2 = jnp.sum(stats[:, 1, :], axis=0)
    mean = s1 / M
    var = jnp.maximum(s2 / M - mean * mean, 0.0)   # guard single-pass cancellation
    invstd = jax.lax.rsqrt(var + eps)

    gamma_p = jnp.pad(gamma.astype(jnp.float32), (0, Cp - Cout))
    beta_p = jnp.pad(beta.astype(jnp.float32), (0, Cp - Cout))
    scale = gamma_p * invstd
    shift = beta_p - mean * scale
    params = jnp.stack([scale, shift], axis=0)      # (2, Cp)

    # Folded BN + ReLU over the flattened (M, Cp) activation; output unpadded Cout.
    conv_flat = conv_out.reshape(M, Cp)
    tm, Mp = _choose_tm(M)
    if Mp != M:
        conv_flat = jnp.pad(conv_flat, ((0, Mp - M), (0, 0)))

    bn_need = 2 * (tm * lane(Cp) * 2 + tm * lane(Cout) * 4 + 8 * lane(Cp) * 4)
    bn_vmem = int(min(64 << 20, max(16 << 20, 2 * bn_need)))

    out = pl.pallas_call(
        functools.partial(_bn_relu_kernel, Cout=Cout),
        out_shape=jax.ShapeDtypeStruct((Mp, Cout), jnp.float32),
        grid_spec=pltpu.PrefetchScalarGridSpec(
            num_scalar_prefetch=0,
            grid=(Mp // tm,),
            in_specs=[
                pl.BlockSpec((tm, Cp), lambda i: (i, 0)),
                pl.BlockSpec((2, Cp), lambda i: (0, 0)),
            ],
            out_specs=pl.BlockSpec((tm, Cout), lambda i: (i, 0)),
        ),
        compiler_params=pltpu.CompilerParams(
            dimension_semantics=("parallel",),
            vmem_limit_bytes=bn_vmem),
    )(conv_flat, params)

    out = out[:M].reshape(N, H, W, Cout)
    # TODO(synk): if downstream consumers accept NHWC (or bf16), drop this final
    # transpose/copy; it only exists to match the PyTorch NCHW interface.
    return jnp.transpose(out, (0, 3, 1, 2))


# ---------------------------------------------------------------------------
# Pure-JAX f32 reference (exact PyTorch semantics, incl. conv bias).
# ---------------------------------------------------------------------------
def unit_reference(x, w, b, gamma, beta, eps=1e-5):
    y = jax.lax.conv_general_dilated(
        x.astype(jnp.float32), w.astype(jnp.float32),
        window_strides=(1, 1), padding=((1, 1), (1, 1)),
        dimension_numbers=("NCHW", "OIHW", "NCHW"),
    )
    y = y + b.reshape(1, -1, 1, 1)
    mean = jnp.mean(y, axis=(0, 2, 3), keepdims=True)
    var = jnp.mean((y - mean) ** 2, axis=(0, 2, 3), keepdims=True)
    yn = (y - mean) * jax.lax.rsqrt(var + eps)
    return jnp.maximum(yn * gamma.reshape(1, -1, 1, 1) + beta.reshape(1, -1, 1, 1), 0.0)


if __name__ == "__main__":
    key = jax.random.PRNGKey(0)
    k_x, k_w, k_b, k_g, k_be = jax.random.split(key, 5)

    N, Cin, Cout, H, W = 2, 4, 8, 16, 16

    x = jax.random.normal(k_x, (N, Cin, H, W), dtype=jnp.float32)

    # Conv params (PyTorch-like uniform init bound = 1/sqrt(fan_in))
    fan_in = Cin * 3 * 3
    bound = 1.0 / (fan_in ** 0.5)
    w_conv = jax.random.uniform(k_w, (Cout, Cin, 3, 3), minval=-bound, maxval=bound)
    b_conv = jax.random.uniform(k_b, (Cout,), minval=-bound, maxval=bound)

    # BatchNorm affine params (randomized around the PyTorch defaults of 1 / 0)
    gamma = 1.0 + 0.1 * jax.random.normal(k_g, (Cout,), dtype=jnp.float32)
    beta = 0.1 * jax.random.normal(k_be, (Cout,), dtype=jnp.float32)

    out = unit_forward(x, w_conv, b_conv, gamma, beta)
    out = jax.block_until_ready(out)

    ref = unit_reference(x, w_conv, b_conv, gamma, beta)
    assert out.shape == (N, Cout, H, W), out.shape
    # bf16 matmul operands + bf16 conv intermediate => looser tolerance than pure f32.
    max_err = float(jnp.max(jnp.abs(out - ref)))
    mean_err = float(jnp.mean(jnp.abs(out - ref)))
    assert jnp.allclose(out, ref, atol=3e-2, rtol=3e-2), (max_err, mean_err)
    assert mean_err < 1e-2, (max_err, mean_err)

    print("KERNEL_OK")
</pallas_src>

<mosaic_0001>
module attributes {stable_mosaic.version = 11 : i64} {
  func.func @_conv_stats_kernel(%arg0: i32, %arg1: i32, %arg2: memref<1x10x18x4xbf16, #tpu.memory_space<vmem>>, %arg3: memref<36x128xbf16, #tpu.memory_space<vmem>>, %arg4: memref<1x128x128xbf16, #tpu.memory_space<vmem>>, %arg5: memref<1x2x128xf32, #tpu.memory_space<vmem>>, %arg6: memref<128x36xbf16, #tpu.memory_space<vmem>>) attributes {dimension_semantics = [#tpu.dimension_semantics<parallel>, #tpu.dimension_semantics<parallel>], iteration_bounds = array<i64: 2, 2>, scalar_prefetch = 0 : i64, scratch_operands = 1 : i64, tpu.core_type = #tpu.core_type<tc>, window_params = [{transform_indices = @transform_0, window_bounds = array<i64: 1, 10, 18, 4>}, {pipeline_mode = #tpu.pipeline_mode<synchronous>, transform_indices = @transform_1, window_bounds = array<i64: 36, 128>}, {transform_indices = @transform_2, window_bounds = array<i64: 1, 128, 128>}, {transform_indices = @transform_3, window_bounds = array<i64: 1, 2, 128>}]} {
    %c0 = arith.constant 0 : index
    %c0_0 = arith.constant 0 : index
    %c0_1 = arith.constant 0 : index
    %c0_2 = arith.constant 0 : index
    %0 = vector.load %arg2[%c0, %c0_0, %c0_1, %c0_2] : memref<1x10x18x4xbf16, #tpu.memory_space<vmem>>, vector<1x8x16x4xbf16>
    %1 = vector.shape_cast %0 : vector<1x8x16x4xbf16> to vector<8x16x4xbf16>
    %2 = vector.shape_cast %1 : vector<8x16x4xbf16> to vector<128x4xbf16>
    %c0_3 = arith.constant 0 : index
    %c0_4 = arith.constant 0 : index
    %3 = vector.load %arg6[%c0_3, %c0_4] : memref<128x36xbf16, #tpu.memory_space<vmem>>, vector<128x4xbf16>
    tpu.vector_store %arg6[%c0_3, %c0_4], %2 {strides = array<i32>} : memref<128x36xbf16, #tpu.memory_space<vmem>>, vector<128x4xbf16>,
    %c0_5 = arith.constant 0 : index
    %c0_6 = arith.constant 0 : index
    %c1 = arith.constant 1 : index
    %c0_7 = arith.constant 0 : index
    %4 = vector.load %arg2[%c0_5, %c0_6, %c1, %c0_7] : memref<1x10x18x4xbf16, #tpu.memory_space<vmem>>, vector<1x8x16x4xbf16>
    %5 = vector.shape_cast %4 : vector<1x8x16x4xbf16> to vector<8x16x4xbf16>
    %6 = vector.shape_cast %5 : vector<8x16x4xbf16> to vector<128x4xbf16>
    %c0_8 = arith.constant 0 : index
    %c4 = arith.constant 4 : index
    %7 = vector.load %arg6[%c0_8, %c4] : memref<128x36xbf16, #tpu.memory_space<vmem>>, vector<128x4xbf16>
    tpu.vector_store %arg6[%c0_8, %c4], %6 {strides = array<i32>} : memref<128x36xbf16, #tpu.memory_space<vmem>>, vector<128x4xbf16>,
    %c0_9 = arith.constant 0 : index
    %c0_10 = arith.constant 0 : index
    %c2 = arith.constant 2 : index
    %c0_11 = arith.constant 0 : index
    %8 = vector.load %arg2[%c0_9, %c0_10, %c2, %c0_11] : memref<1x10x18x4xbf16, #tpu.memory_space<vmem>>, vector<1x8x16x4xbf16>
    %9 = vector.shape_cast %8 : vector<1x8x16x4xbf16> to vector<8x16x4xbf16>
    %10 = vector.shape_cast %9 : vector<8x16x4xbf16> to vector<128x4xbf16>
    %c0_12 = arith.constant 0 : index
    %c8 = arith.constant 8 : index
    %11 = vector.load %arg6[%c0_12, %c8] : memref<128x36xbf16, #tpu.memory_space<vmem>>, vector<128x4xbf16>
    tpu.vector_store %arg6[%c0_12, %c8], %10 {strides = array<i32>} : memref<128x36xbf16, #tpu.memory_space<vmem>>, vector<128x4xbf16>,
    %c0_13 = arith.constant 0 : index
    %c1_14 = arith.constant 1 : index
    %c0_15 = arith.constant 0 : index
    %c0_16 = arith.constant 0 : index
    %12 = vector.load %arg2[%c0_13, %c1_14, %c0_15, %c0_16] : memref<1x10x18x4xbf16, #tpu.memory_space<vmem>>, vector<1x8x16x4xbf16>
    %13 = vector.shape_cast %12 : vector<1x8x16x4xbf16> to vector<8x16x4xbf16>
    %14 = vector.shape_cast %13 : vector<8x16x4xbf16> to vector<128x4xbf16>
    %c0_17 = arith.constant 0 : index
    %c12 = arith.constant 12 : index
    %15 = vector.load %arg6[%c0_17, %c12] : memref<128x36xbf16, #tpu.memory_space<vmem>>, vector<128x4xbf16>
    tpu.vector_store %arg6[%c0_17, %c12], %14 {strides = array<i32>} : memref<128x36xbf16, #tpu.memory_space<vmem>>, vector<128x4xbf16>,
    %c0_18 = arith.constant 0 : index
    %c1_19 = arith.constant 1 : index
    %c1_20 = arith.constant 1 : index
    %c0_21 = arith.constant 0 : index
    %16 = vector.load %arg2[%c0_18, %c1_19, %c1_20, %c0_21] : memref<1x10x18x4xbf16, #tpu.memory_space<vmem>>, vector<1x8x16x4xbf16>
    %17 = vector.shape_cast %16 : vector<1x8x16x4xbf16> to vector<8x16x4xbf16>
    %18 = vector.shape_cast %17 : vector<8x16x4xbf16> to vector<128x4xbf16>
    %c0_22 = arith.constant 0 : index
    %c16 = arith.constant 16 : index
    %19 = vector.load %arg6[%c0_22, %c16] : memref<128x36xbf16, #tpu.memory_space<vmem>>, vector<128x4xbf16>
    tpu.vector_store %arg6[%c0_22, %c16], %18 {strides = array<i32>} : memref<128x36xbf16, #tpu.memory_space<vmem>>, vector<128x4xbf16>,
    %c0_23 = arith.constant 0 : index
    %c1_24 = arith.constant 1 : index
    %c2_25 = arith.constant 2 : index
    %c0_26 = arith.constant 0 : index
    %20 = vector.load %arg2[%c0_23, %c1_24, %c2_25, %c0_26] : memref<1x10x18x4xbf16, #tpu.memory_space<vmem>>, vector<1x8x16x4xbf16>
    %21 = vector.shape_cast %20 : vector<1x8x16x4xbf16> to vector<8x16x4xbf16>
    %22 = vector.shape_cast %21 : vector<8x16x4xbf16> to vector<128x4xbf16>
    %c0_27 = arith.constant 0 : index
    %c20 = arith.constant 20 : index
    %23 = vector.load %arg6[%c0_27, %c20] : memref<128x36xbf16, #tpu.memory_space<vmem>>, vector<128x4xbf16>
    tpu.vector_store %arg6[%c0_27, %c20], %22 {strides = array<i32>} : memref<128x36xbf16, #tpu.memory_space<vmem>>, vector<128x4xbf16>,
    %c0_28 = arith.constant 0 : index
    %c2_29 = arith.constant 2 : index
    %c0_30 = arith.constant 0 : index
    %c0_31 = arith.constant 0 : index
    %24 = vector.load %arg2[%c0_28, %c2_29, %c0_30, %c0_31] : memref<1x10x18x4xbf16, #tpu.memory_space<vmem>>, vector<1x8x16x4xbf16>
    %25 = vector.shape_cast %24 : vector<1x8x16x4xbf16> to vector<8x16x4xbf16>
    %26 = vector.shape_cast %25 : vector<8x16x4xbf16> to vector<128x4xbf16>
    %c0_32 = arith.constant 0 : index
    %c24 = arith.constant 24 : index
    %27 = vector.load %arg6[%c0_32, %c24] : memref<128x36xbf16, #tpu.memory_space<vmem>>, vector<128x4xbf16>
    tpu.vector_store %arg6[%c0_32, %c24], %26 {strides = array<i32>} : memref<128x36xbf16, #tpu.memory_space<vmem>>, vector<128x4xbf16>,
    %c0_33 = arith.constant 0 : index
    %c2_34 = arith.constant 2 : index
    %c1_35 = arith.constant 1 : index
    %c0_36 = arith.constant 0 : index
    %28 = vector.load %arg2[%c0_33, %c2_34, %c1_35, %c0_36] : memref<1x10x18x4xbf16, #tpu.memory_space<vmem>>, vector<1x8x16x4xbf16>
    %29 = vector.shape_cast %28 : vector<1x8x16x4xbf16> to vector<8x16x4xbf16>
    %30 = vector.shape_cast %29 : vector<8x16x4xbf16> to vector<128x4xbf16>
    %c0_37 = arith.constant 0 : index
    %c28 = arith.constant 28 : index
    %31 = vector.load %arg6[%c0_37, %c28] : memref<128x36xbf16, #tpu.memory_space<vmem>>, vector<128x4xbf16>
    tpu.vector_store %arg6[%c0_37, %c28], %30 {strides = array<i32>} : memref<128x36xbf16, #tpu.memory_space<vmem>>, vector<128x4xbf16>,
    %c0_38 = arith.constant 0 : index
    %c2_39 = arith.constant 2 : index
    %c2_40 = arith.constant 2 : index
    %c0_41 = arith.constant 0 : index
    %32 = vector.load %arg2[%c0_38, %c2_39, %c2_40, %c0_41] : memref<1x10x18x4xbf16, #tpu.memory_space<vmem>>, vector<1x8x16x4xbf16>
    %33 = vector.shape_cast %32 : vector<1x8x16x4xbf16> to vector<8x16x4xbf16>
    %34 = vector.shape_cast %33 : vector<8x16x4xbf16> to vector<128x4xbf16>
    %c0_42 = arith.constant 0 : index
    %c32 = arith.constant 32 : index
    %35 = vector.load %arg6[%c0_42, %c32] : memref<128x36xbf16, #tpu.memory_space<vmem>>, vector<128x4xbf16>
    tpu.vector_store %arg6[%c0_42, %c32], %34 {strides = array<i32>} : memref<128x36xbf16, #tpu.memory_space<vmem>>, vector<128x4xbf16>,
    %c0_43 = arith.constant 0 : index
    %c0_44 = arith.constant 0 : index
    %36 = vector.load %arg6[%c0_43, %c0_44] : memref<128x36xbf16, #tpu.memory_space<vmem>>, vector<128x36xbf16>
    %c0_45 = arith.constant 0 : index
    %c0_46 = arith.constant 0 : index
    %37 = vector.load %arg3[%c0_45, %c0_46] : memref<36x128xbf16, #tpu.memory_space<vmem>>, vector<36x128xbf16>
    %cst = arith.constant dense<0.000000e+00> : vector<128x128xf32>
    %38 = tpu.matmul %36, %37, %cst {dimension_numbers = #tpu.dot_dimension_numbers<[1], [0], [0], [1], [0, 0, 1, 1], [], []>} : vector<128x36xbf16>, vector<36x128xbf16>, vector<128x128xf32> -> vector<128x128xf32>
    %39 = arith.truncf %38 : vector<128x128xf32> to vector<128x128xbf16>
    %c0_47 = arith.constant 0 : index
    %c0_48 = arith.constant 0 : index
    %c0_49 = arith.constant 0 : index
    %40 = vector.load %arg4[%c0_47, %c0_48, %c0_49] : memref<1x128x128xbf16, #tpu.memory_space<vmem>>, vector<1x128x128xbf16>
    %41 = vector.shape_cast %40 : vector<1x128x128xbf16> to vector<128x128xbf16>
    %42 = vector.shape_cast %39 : vector<128x128xbf16> to vector<1x128x128xbf16>
    tpu.vector_store %arg4[%c0_47, %c0_48, %c0_49], %42 {strides = array<i32>} : memref<1x128x128xbf16, #tpu.memory_space<vmem>>, vector<1x128x128xbf16>,
    %43 = arith.extf %39 : vector<128x128xbf16> to vector<128x128xf32>
    %cst_50 = arith.constant dense<0.000000e+00> : vector<128xf32>
    %44 = vector.multi_reduction <add>, %43, %cst_50 [0] : vector<128x128xf32> to vector<128xf32>
    %45 = vector.shape_cast %44 : vector<128xf32> to vector<1x128xf32>
    %46 = arith.mulf %43, %43 : vector<128x128xf32>
    %cst_51 = arith.constant dense<0.000000e+00> : vector<128xf32>
    %47 = vector.multi_reduction <add>, %46, %cst_51 [0] : vector<128x128xf32> to vector<128xf32>
    %48 = vector.shape_cast %47 : vector<128xf32> to vector<1x128xf32>
    %49 = tpu.concatenate %45, %48 in 0 : vector<1x128xf32>, vector<1x128xf32> -> vector<2x128xf32>
    %c0_52 = arith.constant 0 : index
    %c0_53 = arith.constant 0 : index
    %c0_54 = arith.constant 0 : index
    %50 = vector.load %arg5[%c0_52, %c0_53, %c0_54] : memref<1x2x128xf32, #tpu.memory_space<vmem>>, vector<1x2x128xf32>
    %51 = vector.shape_cast %50 : vector<1x2x128xf32> to vector<2x128xf32>
    %52 = vector.shape_cast %49 : vector<2x128xf32> to vector<1x2x128xf32>
    tpu.vector_store %arg5[%c0_52, %c0_53, %c0_54], %52 {strides = array<i32>} : memref<1x2x128xf32, #tpu.memory_space<vmem>>, vector<1x2x128xf32>,
    return
  }
  func.func @transform_0(%arg0: i32, %arg1: i32) -> (i32, i32, i32, i32) {
    %c2_i32 = arith.constant 2 : i32
    %0 = arith.muli %arg0, %c2_i32 : i32
    %1 = arith.addi %0, %arg1 : i32
    %c0_i32 = arith.constant 0 : i32
    %c0_i32_0 = arith.constant 0 : i32
    %c0_i32_1 = arith.constant 0 : i32
    %c0_i32_2 = arith.constant 0 : i32
    return %1, %c0_i32, %c0_i32_0, %c0_i32_1 : i32, i32, i32, i32
  }
  func.func @transform_1(%arg0: i32, %arg1: i32) -> (i32, i32) {
    %c0_i32 = arith.constant 0 : i32
    %c0_i32_0 = arith.constant 0 : i32
    %c0_i32_1 = arith.constant 0 : i32
    return %c0_i32, %c0_i32_0 : i32, i32
  }
  func.func @transform_2(%arg0: i32, %arg1: i32) -> (i32, i32, i32) {
    %c0_i32 = arith.constant 0 : i32
    %c0_i32_0 = arith.constant 0 : i32
    return %arg0, %arg1, %c0_i32 : i32, i32, i32
  }
  func.func @transform_3(%arg0: i32, %arg1: i32) -> (i32, i32, i32) {
    %c2_i32 = arith.constant 2 : i32
    %0 = arith.muli %arg0, %c2_i32 : i32
    %1 = arith.addi %0, %arg1 : i32
    %c0_i32 = arith.constant 0 : i32
    %c0_i32_0 = arith.constant 0 : i32
    %c0_i32_1 = arith.constant 0 : i32
    return %1, %c0_i32, %c0_i32_0 : i32, i32, i32
  }
}

module attributes {stable_mosaic.version = 11 : i64} {
  func.func @_bn_relu_kernel(%arg0: i32, %arg1: memref<512x128xbf16, #tpu.memory_space<vmem>>, %arg2: memref<2x128xf32, #tpu.memory_space<vmem>>, %arg3: memref<512x8xf32, #tpu.memory_space<vmem>>) attributes {dimension_semantics = [#tpu.dimension_semantics<parallel>], iteration_bounds = array<i64: 1>, scalar_prefetch = 0 : i64, scratch_operands = 0 : i64, tpu.core_type = #tpu.core_type<tc>, window_params = [{transform_indices = @transform_0, window_bounds = array<i64: 512, 128>}, {pipeline_mode = #tpu.pipeline_mode<synchronous>, transform_indices = @transform_1, window_bounds = array<i64: 2, 128>}, {transform_indices = @transform_2, window_bounds = array<i64: 512, 8>}]} {
    %c0 = arith.constant 0 : index
    %c0_0 = arith.constant 0 : index
    %0 = vector.load %arg1[%c0, %c0_0] : memref<512x128xbf16, #tpu.memory_space<vmem>>, vector<512x128xbf16>
    %1 = arith.extf %0 : vector<512x128xbf16> to vector<512x128xf32>
    %c0_1 = arith.constant 0 : index
    %c0_2 = arith.constant 0 : index
    %2 = vector.load %arg2[%c0_1, %c0_2] : memref<2x128xf32, #tpu.memory_space<vmem>>, vector<1x128xf32>
    %3 = vector.broadcast %2 : vector<1x128xf32> to vector<512x128xf32>
    %4 = arith.mulf %1, %3 : vector<512x128xf32>
    %c1 = arith.constant 1 : index
    %c0_3 = arith.constant 0 : index
    %5 = vector.load %arg2[%c1, %c0_3] : memref<2x128xf32, #tpu.memory_space<vmem>>, vector<1x128xf32>
    %6 = vector.broadcast %5 : vector<1x128xf32> to vector<512x128xf32>
    %7 = arith.addf %4, %6 : vector<512x128xf32>
    %cst = arith.constant 0.000000e+00 : f32
    %8 = vector.broadcast %cst : f32 to vector<512x128xf32>
    %9 = arith.maximumf %7, %8 : vector<512x128xf32>
    %10 = vector.extract_strided_slice %9 {offsets = [0, 0], sizes = [512, 8], strides = [1, 1]} : vector<512x128xf32> to vector<512x8xf32>
    %c0_4 = arith.constant 0 : index
    %c0_5 = arith.constant 0 : index
    %11 = vector.load %arg3[%c0_4, %c0_5] : memref<512x8xf32, #tpu.memory_space<vmem>>, vector<512x8xf32>
    tpu.vector_store %arg3[%c0_4, %c0_5], %10 {strides = array<i32>} : memref<512x8xf32, #tpu.memory_space<vmem>>, vector<512x8xf32>,
    return
  }
  func.func @transform_0(%arg0: i32) -> (i32, i32) {
    %c0_i32 = arith.constant 0 : i32
    %c0_i32_0 = arith.constant 0 : i32
    return %arg0, %c0_i32 : i32, i32
  }
  func.func @transform_1(%arg0: i32) -> (i32, i32) {
    %c0_i32 = arith.constant 0 : i32
    %c0_i32_0 = arith.constant 0 : i32
    %c0_i32_1 = arith.constant 0 : i32
    return %c0_i32, %c0_i32_0 : i32, i32
  }
  func.func @transform_2(%arg0: i32) -> (i32, i32) {
    %c0_i32 = arith.constant 0 : i32
    %c0_i32_0 = arith.constant 0 : i32
    return %arg0, %c0_i32 : i32, i32
  }
}

</mosaic_0001>

<llo_original>
// kernel: unit_forward.3
$region0: #{unit_forward.3}
  #allocation0 [shape = 'u32[]', space=smem, size = 0x4, offset = 0x4, fixed_abs, tag = 'smem constant byte address 0x4 - core index']
  #allocation1 [shape = 'u32[144,128]{1,0:T(1,128)}', space=vmem, size = 0x12000, scoped, tag = 'internal scratch']
  %s0 = inlined_call_operand.vmem [shape: bf16[512,128], index: 0, kind: input, shape index: {}]
  %s1 = inlined_call_operand.vmem [shape: f32[2,128], index: 1, kind: input, shape index: {}]
  %s2 = inlined_call_operand.vmem [shape: f32[512,8], index: 2, kind: output, shape index: {}]
  %s3 = sld [smem:[#allocation0]]
  $region18: #{unit_forward.3} parent=0
    _
  %s5 = ssub.s32 1, %s3
  %s6 = scalar_select 0, %s5, %s3
  // Predicated region
  $region2: #{unit_forward.3} parent=0 // pred_check
    _
  $region3: #{unit_forward.3} parent=0 // pred_check_branch
    %8 = sbr.rel (0) target = $region5
  $region4: #{unit_forward.3} parent=0 // pred_region
    _
  $region5: #{unit_forward.3} parent=0 // pred_fallthru
    _
  // Predicated region
  $region6: #{unit_forward.3} parent=0 // pred_check
    _
  $region7: #{unit_forward.3} parent=0 // pred_check_branch
    %10 = sbr.rel (0) target = $region9
  $region8: #{unit_forward.3} parent=0 // pred_region
    _
  $region9: #{unit_forward.3} parent=0 // pred_fallthru
    _
  %v11 = vld [vmem:[%s0] sm:$0xf]
  %v12 = vld [vmem:[%s0 + $0x4] sm:$0xf]
  %v13 = vld [vmem:[%s0 + $0x8] sm:$0xf]
  %v14 = vld [vmem:[%s0 + $0xc] sm:$0xf]
  %v15 = vld [vmem:[%s0 + $0x10] sm:$0xf]
  %v16 = vld [vmem:[%s0 + $0x14] sm:$0xf]
  %v17 = vld [vmem:[%s0 + $0x18] sm:$0xf]
  %v18 = vld [vmem:[%s0 + $0x1c] sm:$0xf]
  %v19 = vld [vmem:[%s0 + $0x20] sm:$0xf]
  %v20 = vld [vmem:[%s0 + $0x24] sm:$0xf]
  %v21 = vld [vmem:[%s0 + $0x28] sm:$0xf]
  %v22 = vld [vmem:[%s0 + $0x2c] sm:$0xf]
  %v23 = vld [vmem:[%s0 + $0x30] sm:$0xf]
  %v24 = vld [vmem:[%s0 + $0x34] sm:$0xf]
  %v25 = vld [vmem:[%s0 + $0x38] sm:$0xf]
  %v26 = vld [vmem:[%s0 + $0x3c] sm:$0xf]
  %v27 = vld [vmem:[%s0 + $0x40] sm:$0xf]
  %v28 = vld [vmem:[%s0 + $0x44] sm:$0xf]
  %v29 = vld [vmem:[%s0 + $0x48] sm:$0xf]
  %v30 = vld [vmem:[%s0 + $0x4c] sm:$0xf]
  %v31 = vld [vmem:[%s0 + $0x50] sm:$0xf]
  %v32 = vld [vmem:[%s0 + $0x54] sm:$0xf]
  %v33 = vld [vmem:[%s0 + $0x58] sm:$0xf]
  %v34 = vld [vmem:[%s0 + $0x5c] sm:$0xf]
  %v35 = vld [vmem:[%s0 + $0x60] sm:$0xf]
  %v36 = vld [vmem:[%s0 + $0x64] sm:$0xf]
  %v37 = vld [vmem:[%s0 + $0x68] sm:$0xf]
  %v38 = vld [vmem:[%s0 + $0x6c] sm:$0xf]
  %v39 = vld [vmem:[%s0 + $0x70] sm:$0xf]
  %v40 = vld [vmem:[%s0 + $0x74] sm:$0xf]
  %v41 = vld [vmem:[%s0 + $0x78] sm:$0xf]
  %v42 = vld [vmem:[%s0 + $0x7c] sm:$0xf]
  %v43 = vld [vmem:[%s0 + $0x80] sm:$0xf]
  %v44 = vld [vmem:[%s0 + $0x84] sm:$0xf]
  %v45 = vld [vmem:[%s0 + $0x88] sm:$0xf]
  %v46 = vld [vmem:[%s0 + $0x8c] sm:$0xf]
  %v47 = vld [vmem:[%s0 + $0x90] sm:$0xf]
  %v48 = vld [vmem:[%s0 + $0x94] sm:$0xf]
  %v49 = vld [vmem:[%s0 + $0x98] sm:$0xf]
  %v50 = vld [vmem:[%s0 + $0x9c] sm:$0xf]
  %v51 = vld [vmem:[%s0 + $0xa0] sm:$0xf]
  %v52 = vld [vmem:[%s0 + $0xa4] sm:$0xf]
  %v53 = vld [vmem:[%s0 + $0xa8] sm:$0xf]
  %v54 = vld [vmem:[%s0 + $0xac] sm:$0xf]
  %v55 = vld [vmem:[%s0 + $0xb0] sm:$0xf]
  %v56 = vld [vmem:[%s0 + $0xb4] sm:$0xf]
  %v57 = vld [vmem:[%s0 + $0xb8] sm:$0xf]
  %v58 = vld [vmem:[%s0 + $0xbc] sm:$0xf]
  %v59 = vld [vmem:[%s0 + $0xc0] sm:$0xf]
  %v60 = vld [vmem:[%s0 + $0xc4] sm:$0xf]
  %v61 = vld [vmem:[%s0 + $0xc8] sm:$0xf]
  %v62 = vld [vmem:[%s0 + $0xcc] sm:$0xf]
  %v63 = vld [vmem:[%s0 + $0xd0] sm:$0xf]
  %v64 = vld [vmem:[%s0 + $0xd4] sm:$0xf]
  %v65 = vld [vmem:[%s0 + $0xd8] sm:$0xf]
  %v66 = vld [vmem:[%s0 + $0xdc] sm:$0xf]
  %v67 = vld [vmem:[%s0 + $0xe0] sm:$0xf]
  %v68 = vld [vmem:[%s0 + $0xe4] sm:$0xf]
  %v69 = vld [vmem:[%s0 + $0xe8] sm:$0xf]
  %v70 = vld [vmem:[%s0 + $0xec] sm:$0xf]
  %v71 = vld [vmem:[%s0 + $0xf0] sm:$0xf]
  %v72 = vld [vmem:[%s0 + $0xf4] sm:$0xf]
  %v73 = vld [vmem:[%s0 + $0xf8] sm:$0xf]
  %v74 = vld [vmem:[%s0 + $0xfc] sm:$0xf]
  %v75 = vunpack.c.l.bf16 %v11
  %v76 = vunpack.c.l.bf16 %v12
  %v77 = vunpack.c.l.bf16 %v13
  %v78 = vunpack.c.l.bf16 %v14
  %v79 = vunpack.c.l.bf16 %v15
  %v80 = vunpack.c.l.bf16 %v16
  %v81 = vunpack.c.l.bf16 %v17
  %v82 = vunpack.c.l.bf16 %v18
  %v83 = vunpack.c.l.bf16 %v19
  %v84 = vunpack.c.l.bf16 %v20
  %v85 = vunpack.c.l.bf16 %v21
  %v86 = vunpack.c.l.bf16 %v22
  %v87 = vunpack.c.l.bf16 %v23
  %v88 = vunpack.c.l.bf16 %v24
  %v89 = vunpack.c.l.bf16 %v25
  %v90 = vunpack.c.l.bf16 %v26
  %v91 = vunpack.c.l.bf16 %v27
  %v92 = vunpack.c.l.bf16 %v28
  %v93 = vunpack.c.l.bf16 %v29
  %v94 = vunpack.c.l.bf16 %v30
  %v95 = vunpack.c.l.bf16 %v31
  %v96 = vunpack.c.l.bf16 %v32
  %v97 = vunpack.c.l.bf16 %v33
  %v98 = vunpack.c.l.bf16 %v34
  %v99 = vunpack.c.l.bf16 %v35
  %v100 = vunpack.c.l.bf16 %v36
  %v101 = vunpack.c.l.bf16 %v37
  %v102 = vunpack.c.l.bf16 %v38
  %v103 = vunpack.c.l.bf16 %v39
  %v104 = vunpack.c.l.bf16 %v40
  %v105 = vunpack.c.l.bf16 %v41
  %v106 = vunpack.c.l.bf16 %v42
  %v107 = vunpack.c.l.bf16 %v43
  %v108 = vunpack.c.l.bf16 %v44
  %v109 = vunpack.c.l.bf16 %v45
  %v110 = vunpack.c.l.bf16 %v46
  %v111 = vunpack.c.l.bf16 %v47
  %v112 = vunpack.c.l.bf16 %v48
  %v113 = vunpack.c.l.bf16 %v49
  %v114 = vunpack.c.l.bf16 %v50
  %v115 = vunpack.c.l.bf16 %v51
  %v116 = vunpack.c.l.bf16 %v52
  %v117 = vunpack.c.l.bf16 %v53
  %v118 = vunpack.c.l.bf16 %v54
  %v119 = vunpack.c.l.bf16 %v55
  %v120 = vunpack.c.l.bf16 %v56
  %v121 = vunpack.c.l.bf16 %v57
  %v122 = vunpack.c.l.bf16 %v58
  %v123 = vunpack.c.l.bf16 %v59
  %v124 = vunpack.c.l.bf16 %v60
  %v125 = vunpack.c.l.bf16 %v61
  %v126 = vunpack.c.l.bf16 %v62
  %v127 = vunpack.c.l.bf16 %v63
  %v128 = vunpack.c.l.bf16 %v64
  %v129 = vunpack.c.l.bf16 %v65
  %v130 = vunpack.c.l.bf16 %v66
  %v131 = vunpack.c.l.bf16 %v67
  %v132 = vunpack.c.l.bf16 %v68
  %v133 = vunpack.c.l.bf16 %v69
  %v134 = vunpack.c.l.bf16 %v70
  %v135 = vunpack.c.l.bf16 %v71
  %v136 = vunpack.c.l.bf16 %v72
  %v137 = vunpack.c.l.bf16 %v73
  %v138 = vunpack.c.l.bf16 %v74
  %v139 = vld [vmem:[%s1] sm:$0x1]
  %v140 = vlaneseq
  %v141 = vshrl.u32 %v140, 7
  %v142 = vsub.s32 0, %v141
  %v143 = vrot.slane %v139, %v142
  %v144 = vmul.f32 %v75, %v143
  %v145 = vmul.f32 %v76, %v143
  %v146 = vmul.f32 %v77, %v143
  %v147 = vmul.f32 %v78, %v143
  %v148 = vmul.f32 %v79, %v143
  %v149 = vmul.f32 %v80, %v143
  %v150 = vmul.f32 %v81, %v143
  %v151 = vmul.f32 %v82, %v143
  %v152 = vmul.f32 %v83, %v143
  %v153 = vmul.f32 %v84, %v143
  %v154 = vmul.f32 %v85, %v143
  %v155 = vmul.f32 %v86, %v143
  %v156 = vmul.f32 %v87, %v143
  %v157 = vmul.f32 %v88, %v143
  %v158 = vmul.f32 %v89, %v143
  %v159 = vmul.f32 %v90, %v143
  %v160 = vmul.f32 %v91, %v143
  %v161 = vmul.f32 %v92, %v143
  %v162 = vmul.f32 %v93, %v143
  %v163 = vmul.f32 %v94, %v143
  %v164 = vmul.f32 %v95, %v143
  %v165 = vmul.f32 %v96, %v143
  %v166 = vmul.f32 %v97, %v143
  %v167 = vmul.f32 %v98, %v143
  %v168 = vmul.f32 %v99, %v143
  %v169 = vmul.f32 %v100, %v143
  %v170 = vmul.f32 %v101, %v143
  %v171 = vmul.f32 %v102, %v143
  %v172 = vmul.f32 %v103, %v143
  %v173 = vmul.f32 %v104, %v143
  %v174 = vmul.f32 %v105, %v143
  %v175 = vmul.f32 %v106, %v143
  %v176 = vmul.f32 %v107, %v143
  %v177 = vmul.f32 %v108, %v143
  %v178 = vmul.f32 %v109, %v143
  %v179 = vmul.f32 %v110, %v143
  %v180 = vmul.f32 %v111, %v143
  %v181 = vmul.f32 %v112, %v143
  %v182 = vmul.f32 %v113, %v143
  %v183 = vmul.f32 %v114, %v143
  %v184 = vmul.f32 %v115, %v143
  %v185 = vmul.f32 %v116, %v143
  %v186 = vmul.f32 %v117, %v143
  %v187 = vmul.f32 %v118, %v143
  %v188 = vmul.f32 %v119, %v143
  %v189 = vmul.f32 %v120, %v143
  %v190 = vmul.f32 %v121, %v143
  %v191 = vmul.f32 %v122, %v143
  %v192 = vmul.f32 %v123, %v143
  %v193 = vmul.f32 %v124, %v143
  %v194 = vmul.f32 %v125, %v143
  %v195 = vmul.f32 %v126, %v143
  %v196 = vmul.f32 %v127, %v143
  %v197 = vmul.f32 %v128, %v143
  %v198 = vmul.f32 %v129, %v143
  %v199 = vmul.f32 %v130, %v143
  %v200 = vmul.f32 %v131, %v143
  %v201 = vmul.f32 %v132, %v143
  %v202 = vmul.f32 %v133, %v143
  %v203 = vmul.f32 %v134, %v143
  %v204 = vmul.f32 %v135, %v143
  %v205 = vmul.f32 %v136, %v143
  %v206 = vmul.f32 %v137, %v143
  %v207 = vmul.f32 %v138, %v143
  %v208 = vld [vmem:[%s1 + $0x1] sm:$0x1]
  %v209 = vlaneseq
  %v210 = vshrl.u32 %v209, 7
  %v211 = vsub.s32 0, %v210
  %v212 = vrot.slane %v208, %v211
  %v213 = vadd.f32 %v144, %v212
  %v214 = vadd.f32 %v145, %v212
  %v215 = vadd.f32 %v146, %v212
  %v216 = vadd.f32 %v147, %v212
  %v217 = vadd.f32 %v148, %v212
  %v218 = vadd.f32 %v149, %v212
  %v219 = vadd.f32 %v150, %v212
  %v220 = vadd.f32 %v151, %v212
  %v221 = vadd.f32 %v152, %v212
  %v222 = vadd.f32 %v153, %v212
  %v223 = vadd.f32 %v154, %v212
  %v224 = vadd.f32 %v155, %v212
  %v225 = vadd.f32 %v156, %v212
  %v226 = vadd.f32 %v157, %v212
  %v227 = vadd.f32 %v158, %v212
  %v228 = vadd.f32 %v159, %v212
  %v229 = vadd.f32 %v160, %v212
  %v230 = vadd.f32 %v161, %v212
  %v231 = vadd.f32 %v162, %v212
  %v232 = vadd.f32 %v163, %v212
  %v233 = vadd.f32 %v164, %v212
  %v234 = vadd.f32 %v165, %v212
  %v235 = vadd.f32 %v166, %v212
  %v236 = vadd.f32 %v167, %v212
  %v237 = vadd.f32 %v168, %v212
  %v238 = vadd.f32 %v169, %v212
  %v239 = vadd.f32 %v170, %v212
  %v240 = vadd.f32 %v171, %v212
  %v241 = vadd.f32 %v172, %v212
  %v242 = vadd.f32 %v173, %v212
  %v243 = vadd.f32 %v174, %v212
  %v244 = vadd.f32 %v175, %v212
  %v245 = vadd.f32 %v176, %v212
  %v246 = vadd.f32 %v177, %v212
  %v247 = vadd.f32 %v178, %v212
  %v248 = vadd.f32 %v179, %v212
  %v249 = vadd.f32 %v180, %v212
  %v250 = vadd.f32 %v181, %v212
  %v251 = vadd.f32 %v182, %v212
  %v252 = vadd.f32 %v183, %v212
  %v253 = vadd.f32 %v184, %v212
  %v254 = vadd.f32 %v185, %v212
  %v255 = vadd.f32 %v186, %v212
  %v256 = vadd.f32 %v187, %v212
  %v257 = vadd.f32 %v188, %v212
  %v258 = vadd.f32 %v189, %v212
  %v259 = vadd.f32 %v190, %v212
  %v260 = vadd.f32 %v191, %v212
  %v261 = vadd.f32 %v192, %v212
  %v262 = vadd.f32 %v193, %v212
  %v263 = vadd.f32 %v194, %v212
  %v264 = vadd.f32 %v195, %v212
  %v265 = vadd.f32 %v196, %v212
  %v266 = vadd.f32 %v197, %v212
  %v267 = vadd.f32 %v198, %v212
  %v268 = vadd.f32 %v199, %v212
  %v269 = vadd.f32 %v200, %v212
  %v270 = vadd.f32 %v201, %v212
  %v271 = vadd.f32 %v202, %v212
  %v272 = vadd.f32 %v203, %v212
  %v273 = vadd.f32 %v204, %v212
  %v274 = vadd.f32 %v205, %v212
  %v275 = vadd.f32 %v206, %v212
  %v276 = vadd.f32 %v207, %v212
  %v277 = vmax.f32 %v213, 0.0
  %v278 = vmax.f32 %v214, 0.0
  %v279 = vmax.f32 %v215, 0.0
  %v280 = vmax.f32 %v216, 0.0
  %v281 = vmax.f32 %v217, 0.0
  %v282 = vmax.f32 %v218, 0.0
  %v283 = vmax.f32 %v219, 0.0
  %v284 = vmax.f32 %v220, 0.0
  %v285 = vmax.f32 %v221, 0.0
  %v286 = vmax.f32 %v222, 0.0
  %v287 = vmax.f32 %v223, 0.0
  %v288 = vmax.f32 %v224, 0.0
  %v289 = vmax.f32 %v225, 0.0
  %v290 = vmax.f32 %v226, 0.0
  %v291 = vmax.f32 %v227, 0.0
  %v292 = vmax.f32 %v228, 0.0
  %v293 = vmax.f32 %v229, 0.0
  %v294 = vmax.f32 %v230, 0.0
  %v295 = vmax.f32 %v231, 0.0
  %v296 = vmax.f32 %v232, 0.0
  %v297 = vmax.f32 %v233, 0.0
  %v298 = vmax.f32 %v234, 0.0
  %v299 = vmax.f32 %v235, 0.0
  %v300 = vmax.f32 %v236, 0.0
  %v301 = vmax.f32 %v237, 0.0
  %v302 = vmax.f32 %v238, 0.0
  %v303 = vmax.f32 %v239, 0.0
  %v304 = vmax.f32 %v240, 0.0
  %v305 = vmax.f32 %v241, 0.0
  %v306 = vmax.f32 %v242, 0.0
  %v307 = vmax.f32 %v243, 0.0
  %v308 = vmax.f32 %v244, 0.0
  %v309 = vmax.f32 %v245, 0.0
  %v310 = vmax.f32 %v246, 0.0
  %v311 = vmax.f32 %v247, 0.0
  %v312 = vmax.f32 %v248, 0.0
  %v313 = vmax.f32 %v249, 0.0
  %v314 = vmax.f32 %v250, 0.0
  %v315 = vmax.f32 %v251, 0.0
  %v316 = vmax.f32 %v252, 0.0
  %v317 = vmax.f32 %v253, 0.0
  %v318 = vmax.f32 %v254, 0.0
  %v319 = vmax.f32 %v255, 0.0
  %v320 = vmax.f32 %v256, 0.0
  %v321 = vmax.f32 %v257, 0.0
  %v322 = vmax.f32 %v258, 0.0
  %v323 = vmax.f32 %v259, 0.0
  %v324 = vmax.f32 %v260, 0.0
  %v325 = vmax.f32 %v261, 0.0
  %v326 = vmax.f32 %v262, 0.0
  %v327 = vmax.f32 %v263, 0.0
  %v328 = vmax.f32 %v264, 0.0
  %v329 = vmax.f32 %v265, 0.0
  %v330 = vmax.f32 %v266, 0.0
  %v331 = vmax.f32 %v267, 0.0
  %v332 = vmax.f32 %v268, 0.0
  %v333 = vmax.f32 %v269, 0.0
  %v334 = vmax.f32 %v270, 0.0
  %v335 = vmax.f32 %v271, 0.0
  %v336 = vmax.f32 %v272, 0.0
  %v337 = vmax.f32 %v273, 0.0
  %v338 = vmax.f32 %v274, 0.0
  %v339 = vmax.f32 %v275, 0.0
  %v340 = vmax.f32 %v276, 0.0
  %vm341 = vcmask 64512
  %342 = vst.msk [vmem:[%s2] sm:$0xff] %vm341, %v277
  %343 = vst.msk [vmem:[%s2 + $0x8] sm:$0xff] %vm341, %v278
  %344 = vst.msk [vmem:[%s2 + $0x10] sm:$0xff] %vm341, %v279
  %345 = vst.msk [vmem:[%s2 + $0x18] sm:$0xff] %vm341, %v280
  %346 = vst.msk [vmem:[%s2 + $0x20] sm:$0xff] %vm341, %v281
  %347 = vst.msk [vmem:[%s2 + $0x28] sm:$0xff] %vm341, %v282
  %348 = vst.msk [vmem:[%s2 + $0x30] sm:$0xff] %vm341, %v283
  %349 = vst.msk [vmem:[%s2 + $0x38] sm:$0xff] %vm341, %v284
  %350 = vst.msk [vmem:[%s2 + $0x40] sm:$0xff] %vm341, %v285
  %351 = vst.msk [vmem:[%s2 + $0x48] sm:$0xff] %vm341, %v286
  %352 = vst.msk [vmem:[%s2 + $0x50] sm:$0xff] %vm341, %v287
  %353 = vst.msk [vmem:[%s2 + $0x58] sm:$0xff] %vm341, %v288
  %354 = vst.msk [vmem:[%s2 + $0x60] sm:$0xff] %vm341, %v289
  %355 = vst.msk [vmem:[%s2 + $0x68] sm:$0xff] %vm341, %v290
  %356 = vst.msk [vmem:[%s2 + $0x70] sm:$0xff] %vm341, %v291
  %357 = vst.msk [vmem:[%s2 + $0x78] sm:$0xff] %vm341, %v292
  %358 = vst.msk [vmem:[%s2 + $0x80] sm:$0xff] %vm341, %v293
  %359 = vst.msk [vmem:[%s2 + $0x88] sm:$0xff] %vm341, %v294
  %360 = vst.msk [vmem:[%s2 + $0x90] sm:$0xff] %vm341, %v295
  %361 = vst.msk [vmem:[%s2 + $0x98] sm:$0xff] %vm341, %v296
  %362 = vst.msk [vmem:[%s2 + $0xa0] sm:$0xff] %vm341, %v297
  %363 = vst.msk [vmem:[%s2 + $0xa8] sm:$0xff] %vm341, %v298
  %364 = vst.msk [vmem:[%s2 + $0xb0] sm:$0xff] %vm341, %v299
  %365 = vst.msk [vmem:[%s2 + $0xb8] sm:$0xff] %vm341, %v300
  %366 = vst.msk [vmem:[%s2 + $0xc0] sm:$0xff] %vm341, %v301
  %367 = vst.msk [vmem:[%s2 + $0xc8] sm:$0xff] %vm341, %v302
  %368 = vst.msk [vmem:[%s2 + $0xd0] sm:$0xff] %vm341, %v303
  %369 = vst.msk [vmem:[%s2 + $0xd8] sm:$0xff] %vm341, %v304
  %370 = vst.msk [vmem:[%s2 + $0xe0] sm:$0xff] %vm341, %v305
  %371 = vst.msk [vmem:[%s2 + $0xe8] sm:$0xff] %vm341, %v306
  %372 = vst.msk [vmem:[%s2 + $0xf0] sm:$0xff] %vm341, %v307
  %373 = vst.msk [vmem:[%s2 + $0xf8] sm:$0xff] %vm341, %v308
  %374 = vst.msk [vmem:[%s2 + $0x100] sm:$0xff] %vm341, %v309
  %375 = vst.msk [vmem:[%s2 + $0x108] sm:$0xff] %vm341, %v310
  %376 = vst.msk [vmem:[%s2 + $0x110] sm:$0xff] %vm341, %v311
  %377 = vst.msk [vmem:[%s2 + $0x118] sm:$0xff] %vm341, %v312
  %378 = vst.msk [vmem:[%s2 + $0x120] sm:$0xff] %vm341, %v313
  %379 = vst.msk [vmem:[%s2 + $0x128] sm:$0xff] %vm341, %v314
  %380 = vst.msk [vmem:[%s2 + $0x130] sm:$0xff] %vm341, %v315
  %381 = vst.msk [vmem:[%s2 + $0x138] sm:$0xff] %vm341, %v316
  %382 = vst.msk [vmem:[%s2 + $0x140] sm:$0xff] %vm341, %v317
  %383 = vst.msk [vmem:[%s2 + $0x148] sm:$0xff] %vm341, %v318
  %384 = vst.msk [vmem:[%s2 + $0x150] sm:$0xff] %vm341, %v319
  %385 = vst.msk [vmem:[%s2 + $0x158] sm:$0xff] %vm341, %v320
  %386 = vst.msk [vmem:[%s2 + $0x160] sm:$0xff] %vm341, %v321
  %387 = vst.msk [vmem:[%s2 + $0x168] sm:$0xff] %vm341, %v322
  %388 = vst.msk [vmem:[%s2 + $0x170] sm:$0xff] %vm341, %v323
  %389 = vst.msk [vmem:[%s2 + $0x178] sm:$0xff] %vm341, %v324
  %390 = vst.msk [vmem:[%s2 + $0x180] sm:$0xff] %vm341, %v325
  %391 = vst.msk [vmem:[%s2 + $0x188] sm:$0xff] %vm341, %v326
  %392 = vst.msk [vmem:[%s2 + $0x190] sm:$0xff] %vm341, %v327
  %393 = vst.msk [vmem:[%s2 + $0x198] sm:$0xff] %vm341, %v328
  %394 = vst.msk [vmem:[%s2 + $0x1a0] sm:$0xff] %vm341, %v329
  %395 = vst.msk [vmem:[%s2 + $0x1a8] sm:$0xff] %vm341, %v330
  %396 = vst.msk [vmem:[%s2 + $0x1b0] sm:$0xff] %vm341, %v331
  %397 = vst.msk [vmem:[%s2 + $0x1b8] sm:$0xff] %vm341, %v332
  %398 = vst.msk [vmem:[%s2 + $0x1c0] sm:$0xff] %vm341, %v333
  %399 = vst.msk [vmem:[%s2 + $0x1c8] sm:$0xff] %vm341, %v334
  %400 = vst.msk [vmem:[%s2 + $0x1d0] sm:$0xff] %vm341, %v335
  %401 = vst.msk [vmem:[%s2 + $0x1d8] sm:$0xff] %vm341, %v336
  %402 = vst.msk [vmem:[%s2 + $0x1e0] sm:$0xff] %vm341, %v337
  %403 = vst.msk [vmem:[%s2 + $0x1e8] sm:$0xff] %vm341, %v338
  %404 = vst.msk [vmem:[%s2 + $0x1f0] sm:$0xff] %vm341, %v339
  %405 = vst.msk [vmem:[%s2 + $0x1f8] sm:$0xff] %vm341, %v340
  // Predicated region
  $region10: #{unit_forward.3} parent=0 // pred_check
    _
  $region11: #{unit_forward.3} parent=0 // pred_check_branch
    %407 = sbr.rel (0) target = $region13
  $region12: #{unit_forward.3} parent=0 // pred_region
    _
  $region13: #{unit_forward.3} parent=0 // pred_fallthru
    _
  // Predicated region
  $region14: #{unit_forward.3} parent=0 // pred_check
    _
  $region15: #{unit_forward.3} parent=0 // pred_check_branch
    %409 = sbr.rel (0) target = $region17
  $region16: #{unit_forward.3} parent=0 // pred_region
    _
  $region17: #{unit_forward.3} parent=0 // pred_fallthru
    _

// kernel: unit_forward.2
$region0: #{unit_forward.2}
  #allocation0 [shape = 'u32[]', space=smem, size = 0x4, offset = 0x4, fixed_abs, tag = 'smem constant byte address 0x4 - core index']
  #allocation1 [shape = 'u32[144,128]{1,0:T(1,128)}', space=vmem, size = 0x12000, scoped, tag = 'internal scratch']
  #allocation2 [shape = 'bf16[128,36]{1,0:T(8,128)(2,1)}', space=vmem, size = 0x8000, scoped, tag = 'scratch operand']
  %s0 = inlined_call_operand.vmem [shape: bf16[4,10,18,4], index: 0, kind: input, shape index: {}]
  %s1 = inlined_call_operand.vmem [shape: bf16[36,128], index: 1, kind: input, shape index: {}]
  %s2 = inlined_call_operand.vmem [shape: bf16[2,256,128], index: 2, kind: output, shape index: {0}]
  %s3 = inlined_call_operand.vmem [shape: f32[4,2,128], index: 3, kind: output, shape index: {1}]
  %4 = xla_tuple %s2, %s3
  %s5 = sld [smem:[#allocation0]]
  $region49: #{unit_forward.2} parent=0
    _
  %s7 = ssub.s32 1, %s5
  %s8 = scalar_select 0, %s7, %s5
  loop: start=0, step=1, limit=6
  $region2: #{unit_forward.2} parent=0 // loop_pre_header
    _
  $region3: #{unit_forward.2} parent=0 // loop_header
    %s10 = sphi 0, %s14
    %p11 = scmp.ge.s32.totalorder %s10, 6
    %s17 = sphi 0, %s29
    %s18 = sphi 0, %s25
    %s19 = sphi 0, %s17
    %s20 = sphi 0, %s18
    %s21 = sphi 0, %s19
    %s22 = sphi 0, %s20
    %s36 = sphi 0, %s38
    %s39 = sphi 0, %s36
    %s40 = sphi 0, %s39
    %s56 = sphi 0, %s40
    %s60 = sphi 0, %s60
    %s62 = sphi 0, %s60
    %s63 = sphi 0, %s62
    %s77 = sphi 0, %s63
    %s85 = sphi 0, %s87
    %s88 = sphi 0, %s85
    %s89 = sphi 0, %s88
    %s105 = sphi 0, %s89
    %s115 = sphi 0, %s117
    %s118 = sphi 0, %s115
    %s119 = sphi 0, %s118
    %s135 = sphi 0, %s119
  $region4: #{unit_forward.2} parent=0 // loop_header_branch
    %13 = sbr.rel (%p11) target = $region8
  $region5: #{unit_forward.2} parent=0 // loop_body
    %s15 = ssub.s32 %s10, 1
    %s16 = ssub.s32 %s10, 2
    %s23 = sadd.s32 1, %s18
    %p24 = scmp.ge.s32.totalorder %s23, 2
    %s25 = scalar_select %p24, 0, %s23
    %s26 = sadd.s32 1, %s17
    %s27 = scalar_select %p24, %s26, %s17
    %p28 = scmp.ge.s32.totalorder %s27, 2
    %s29 = scalar_select %p28, 0, %s27
    %s30 = smul.u32 %s17, 2
    %s31 = sadd.s32 %s30, %s18
    %s32 = smul.u32 %s29, 2
    %s33 = sadd.s32 %s32, %s25
    %s34 = ssub.s32 %s31, %s33
    %p35 = scmp.eq.s32.totalorder %s34, 0
    %s37 = sadd.s32 %s36, 1
    %s38 = scalar_select %p35, %s36, %s37
    %p41 = pneg %p35
    %p42 = scmp.eq.s32.totalorder %s10, 3
    %p43 = por %p41, %p42
    %p44 = scmp.ne.s32.totalorder %s36, %s39
    %p45 = scmp.eq.s32.totalorder %s10, 0
    %p46 = por %p44, %p45
    %p47 = scmp.ne.s32.totalorder %s36, %s39
    %p48 = scmp.eq.s32.totalorder %s15, 3
    %p49 = por %p47, %p48
    %p50 = scmp.ne.s32.totalorder %s39, %s40
    %p51 = scmp.eq.s32.totalorder %s15, 0
    %p52 = por %p50, %p51
    %p53 = scmp.ne.s32.totalorder %s39, %s40
    %p54 = scmp.eq.s32.totalorder %s16, 3
    %p55 = por %p53, %p54
    %p57 = scmp.ne.s32.totalorder %s40, %s56
    %p58 = scmp.eq.s32.totalorder %s16, 0
    %p59 = por %p57, %p58
    %s61 = sadd.s32 %s60, 1
    %p64 = scmp.eq.s32.totalorder %s10, 3
    %p65 = scmp.ne.s32.totalorder %s60, %s62
    %p66 = scmp.eq.s32.totalorder %s10, 0
    %p67 = por %p65, %p66
    %p68 = scmp.ne.s32.totalorder %s60, %s62
    %p69 = scmp.eq.s32.totalorder %s15, 3
    %p70 = por %p68, %p69
    %p71 = scmp.ne.s32.totalorder %s62, %s63
    %p72 = scmp.eq.s32.totalorder %s15, 0
    %p73 = por %p71, %p72
    %p74 = scmp.ne.s32.totalorder %s62, %s63
    %p75 = scmp.eq.s32.totalorder %s16, 3
    %p76 = por %p74, %p75
    %p78 = scmp.ne.s32.totalorder %s63, %s77
    %p79 = scmp.eq.s32.totalorder %s16, 0
    %p80 = por %p78, %p79
    %s81 = ssub.s32 %s17, %s29
    %s82 = ssub.s32 %s18, %s25
    %s83 = sor.u32 %s81, %s82
    %p84 = scmp.eq.s32.totalorder %s83, 0
    %s86 = sadd.s32 %s85, 1
    %s87 = scalar_select %p84, %s85, %s86
    %p90 = pneg %p84
    %p91 = scmp.eq.s32.totalorder %s10, 3
    %p92 = por %p90, %p91
    %p93 = scmp.ne.s32.totalorder %s85, %s88
    %p94 = scmp.eq.s32.totalorder %s10, 0
    %p95 = por %p93, %p94
    %p96 = scmp.ne.s32.totalorder %s85, %s88
    %p97 = scmp.eq.s32.totalorder %s15, 3
    %p98 = por %p96, %p97
    %p99 = scmp.ne.s32.totalorder %s88, %s89
    %p100 = scmp.eq.s32.totalorder %s15, 0
    %p101 = por %p99, %p100
    %p102 = scmp.ne.s32.totalorder %s88, %s89
    %p103 = scmp.eq.s32.totalorder %s16, 3
    %p104 = por %p102, %p103
    %p106 = scmp.ne.s32.totalorder %s89, %s105
    %p107 = scmp.eq.s32.totalorder %s16, 0
    %p108 = por %p106, %p107
    %s109 = smul.u32 %s17, 2
    %s110 = sadd.s32 %s109, %s18
    %s111 = smul.u32 %s29, 2
    %s112 = sadd.s32 %s111, %s25
    %s113 = ssub.s32 %s110, %s112
    %p114 = scmp.eq.s32.totalorder %s113, 0
    %s116 = sadd.s32 %s115, 1
    %s117 = scalar_select %p114, %s115, %s116
    %p120 = pneg %p114
    %p121 = scmp.eq.s32.totalorder %s10, 3
    %p122 = por %p120, %p121
    %p123 = scmp.ne.s32.totalorder %s115, %s118
    %p124 = scmp.eq.s32.totalorder %s10, 0
    %p125 = por %p123, %p124
    %p126 = scmp.ne.s32.totalorder %s115, %s118
    %p127 = scmp.eq.s32.totalorder %s15, 3
    %p128 = por %p126, %p127
    %p129 = scmp.ne.s32.totalorder %s118, %s119
    %p130 = scmp.eq.s32.totalorder %s15, 0
    %p131 = por %p129, %p130
    %p132 = scmp.ne.s32.totalorder %s118, %s119
    %p133 = scmp.eq.s32.totalorder %s16, 3
    %p134 = por %p132, %p133
    %p136 = scmp.ne.s32.totalorder %s119, %s135
    %p137 = scmp.eq.s32.totalorder %s16, 0
    %p138 = por %p136, %p137
    %p139 = scmp.le.s32.totalorder 1, %s10
    %p140 = scmp.lt.s32.totalorder %s10, 5
    %p141 = pnand %p139, %p140
    %p142 = pneg %p141
    // Predicated region
    $region9: #{unit_forward.2} parent=5 // pred_check
      _
    $region10: #{unit_forward.2} parent=5 // pred_check_branch
      %144 = sbr.rel (%p141) target = $region12
    $region11: #{unit_forward.2} parent=5 // pred_region
      %s145 = ssub.s32 %s10, 1
      // Predicated region
      $region13: #{unit_forward.2} parent=11 // pred_check
        %p146 = pneg %p73
      $region14: #{unit_forward.2} parent=11 // pred_check_branch
        %148 = sbr.rel (%p146) target = $region16
      $region15: #{unit_forward.2} parent=11 // pred_region
        _
      $region16: #{unit_forward.2} parent=11 // pred_fallthru
        _
    $region12: #{unit_forward.2} parent=5 // pred_fallthru
      _
    %p149 = scmp.lt.s32.totalorder %s10, 4
    // Predicated region
    $region17: #{unit_forward.2} parent=5 // pred_check
      %p150 = pneg %p149
    $region18: #{unit_forward.2} parent=5 // pred_check_branch
      %152 = sbr.rel (%p150) target = $region20
    $region19: #{unit_forward.2} parent=5 // pred_region
      // Predicated region
      $region21: #{unit_forward.2} parent=19 // pred_check
        %p153 = pneg %p46
      $region22: #{unit_forward.2} parent=19 // pred_check_branch
        %155 = sbr.rel (%p153) target = $region24
      $region23: #{unit_forward.2} parent=19 // pred_region
        %s156 = smul.u32 %s17, 2
        %s157 = sadd.s32 %s156, %s18
        %p158 = scmp.lt.s32.totalorder %s157, 3
        %s159 = scalar_select %p158, %s157, 3
        %s160 = smul.addr %s159, 30
        %s161 = smul.addr %s160, 4
        %s162 = scalar_lea.vmem %s0, %s161
        %s163 = smul.u32 %s17, 2
        %s164 = sadd.s32 %s163, %s18
      $region24: #{unit_forward.2} parent=19 // pred_fallthru
        _
    $region20: #{unit_forward.2} parent=5 // pred_fallthru
      _
    %p165 = scmp.le.s32.totalorder 1, %s10
    %p166 = scmp.lt.s32.totalorder %s10, 5
    %p167 = pnand %p165, %p166
    %p168 = pneg %p167
    // Predicated region
    $region25: #{unit_forward.2} parent=5 // pred_check
      _
    $region26: #{unit_forward.2} parent=5 // pred_check_branch
      %170 = sbr.rel (%p167) target = $region28
    $region27: #{unit_forward.2} parent=5 // pred_region
      %s171 = ssub.s32 %s10, 1
      %s172 = smul.u32 %s19, 2
      %s173 = sadd.s32 %s172, %s20
      %p174 = scmp.lt.s32.totalorder %s173, 3
      %s175 = scalar_select %p174, %s173, 3
      %s176 = smul.addr %s175, 30
      %s177 = smul.addr %s176, 4
      %s178 = scalar_lea.vmem %s0, %s177
      %p179 = pneg %p52
      %p180 = pneg %p49
      %p181 = pneg %p73
      %p182 = pneg %p70
      %p183 = pneg %p101
      %p184 = pneg %p98
      %s185 = smul.u32 16, %s20
      %p186 = scmp.lt.s32.totalorder %s19, 1
      %s187 = scalar_select %p186, %s19, 1
      %p188 = scmp.lt.s32.totalorder %s185, 31
      %s189 = scalar_select %p188, %s185, 31
      %s190 = smul.addr %s187, 32
      %s191 = sadd.s32 %s189, %s190
      %s192 = smul.addr %s191, 4
      %s193 = scalar_lea.vmem %s2, %s192
      %p194 = pneg %p131
      %p195 = pneg %p128
      %s196 = smul.u32 %s19, 2
      %s197 = sadd.s32 %s196, %s20
      %p198 = scmp.lt.s32.totalorder %s197, 3
      %s199 = scalar_select %p198, %s197, 3
      %s200 = smul.addr %s199, 2
      %s201 = scalar_lea.vmem %s3, %s200
      %s202 = smul.u32 %s19, 2
      %s203 = sadd.s32 %s202, %s20
      %p204 = scmp.lt.s32.totalorder %s203, 3
      %s205 = scalar_select %p204, %s203, 3
      %s206 = smul.addr %s205, 30
      %s207 = smul.addr %s206, 4
      %s208 = scalar_lea.vmem %s0, %s207
      %s209 = smul.u32 %s19, 2
      %s210 = sadd.s32 %s209, %s20
      %s211 = smul.u32 16, %s20
      %p212 = scmp.lt.s32.totalorder %s19, 1
      %s213 = scalar_select %p212, %s19, 1
      %p214 = scmp.lt.s32.totalorder %s211, 31
      %s215 = scalar_select %p214, %s211, 31
      %s216 = smul.addr %s213, 32
      %s217 = sadd.s32 %s215, %s216
      %s218 = smul.addr %s217, 4
      %s219 = scalar_lea.vmem %s2, %s218
      %s220 = smul.u32 16, %s20
      %s221 = smul.u32 %s19, 2
      %s222 = sadd.s32 %s221, %s20
      %p223 = scmp.lt.s32.totalorder %s222, 3
      %s224 = scalar_select %p223, %s222, 3
      %s225 = smul.addr %s224, 2
      %s226 = scalar_lea.vmem %s3, %s225
      %s227 = smul.u32 %s19, 2
      %s228 = sadd.s32 %s227, %s20
      %v230 = vld [vmem:[%s208] sm:$0xf]
      %v231 = vld [vmem:[%s208 + $0x4] sm:$0xf]
      %v232 = vld [vmem:[%s208 + $0xc] sm:$0xf]
      %v233 = vld [vmem:[%s208 + $0x10] sm:$0xf]
      %v234 = vld [vmem:[%s208 + $0x18] sm:$0xf]
      %v235 = vld [vmem:[%s208 + $0x1c] sm:$0xf]
      %v236 = vld [vmem:[%s208 + $0x24] sm:$0xf]
      %v237 = vld [vmem:[%s208 + $0x28] sm:$0xf]
      %v238 = vld [vmem:[%s208 + $0x30] sm:$0xf]
      %v239 = vld [vmem:[%s208 + $0x34] sm:$0xf]
      %v240 = vld [vmem:[%s208 + $0x3c] sm:$0xf]
      %v241 = vld [vmem:[%s208 + $0x40] sm:$0xf]
      %v242 = vld [vmem:[%s208 + $0x48] sm:$0xf]
      %v243 = vld [vmem:[%s208 + $0x4c] sm:$0xf]
      %v244 = vld [vmem:[%s208 + $0x54] sm:$0xf]
      %v245 = vld [vmem:[%s208 + $0x58] sm:$0xf]
      %vm246 = vcmask 27648
      %247 = vst.msk [vmem:[#allocation2] sm:$0xf] %vm246, %v230
      %248 = vst.msk [vmem:[#allocation2 + $0x4] sm:$0xf] %vm246, %v231
      %249 = vst.msk [vmem:[#allocation2 + $0x8] sm:$0xf] %vm246, %v232
      %250 = vst.msk [vmem:[#allocation2 + $0xc] sm:$0xf] %vm246, %v233
      %251 = vst.msk [vmem:[#allocation2 + $0x10] sm:$0xf] %vm246, %v234
      %252 = vst.msk [vmem:[#allocation2 + $0x14] sm:$0xf] %vm246, %v235
      %253 = vst.msk [vmem:[#allocation2 + $0x18] sm:$0xf] %vm246, %v236
      %254 = vst.msk [vmem:[#allocation2 + $0x1c] sm:$0xf] %vm246, %v237
      %255 = vst.msk [vmem:[#allocation2 + $0x20] sm:$0xf] %vm246, %v238
      %256 = vst.msk [vmem:[#allocation2 + $0x24] sm:$0xf] %vm246, %v239
      %257 = vst.msk [vmem:[#allocation2 + $0x28] sm:$0xf] %vm246, %v240
      %258 = vst.msk [vmem:[#allocation2 + $0x2c] sm:$0xf] %vm246, %v241
      %259 = vst.msk [vmem:[#allocation2 + $0x30] sm:$0xf] %vm246, %v242
      %260 = vst.msk [vmem:[#allocation2 + $0x34] sm:$0xf] %vm246, %v243
      %261 = vst.msk [vmem:[#allocation2 + $0x38] sm:$0xf] %vm246, %v244
      %262 = vst.msk [vmem:[#allocation2 + $0x3c] sm:$0xf] %vm246, %v245
      %v263 = vld [vmem:[%s208] sm:$0xf]
      %v264 = vld [vmem:[%s208 + $0x4] sm:$0xf]
      %v265 = vld [vmem:[%s208 + $0x8] sm:$0x1]
      %v266 = vld [vmem:[%s208 + $0xc] sm:$0xf]
      %v267 = vld [vmem:[%s208 + $0x10] sm:$0xf]
      %v268 = vld [vmem:[%s208 + $0x14] sm:$0x1]
      %v269 = vld [vmem:[%s208 + $0x18] sm:$0xf]
      %v270 = vld [vmem:[%s208 + $0x1c] sm:$0xf]
      %v271 = vld [vmem:[%s208 + $0x20] sm:$0x1]
      %v272 = vld [vmem:[%s208 + $0x24] sm:$0xf]
      %v273 = vld [vmem:[%s208 + $0x28] sm:$0xf]
      %v274 = vld [vmem:[%s208 + $0x2c] sm:$0x1]
      %v275 = vld [vmem:[%s208 + $0x30] sm:$0xf]
      %v276 = vld [vmem:[%s208 + $0x34] sm:$0xf]
      %v277 = vld [vmem:[%s208 + $0x38] sm:$0x1]
      %v278 = vld [vmem:[%s208 + $0x3c] sm:$0xf]
      %v279 = vld [vmem:[%s208 + $0x40] sm:$0xf]
      %v280 = vld [vmem:[%s208 + $0x44] sm:$0x1]
      %v281 = vld [vmem:[%s208 + $0x48] sm:$0xf]
      %v282 = vld [vmem:[%s208 + $0x4c] sm:$0xf]
      %v283 = vld [vmem:[%s208 + $0x50] sm:$0x1]
      %v284 = vld [vmem:[%s208 + $0x54] sm:$0xf]
      %v285 = vld [vmem:[%s208 + $0x58] sm:$0xf]
      %v286 = vld [vmem:[%s208 + $0x5c] sm:$0x1]
      %vm287 = vsmask.f32 3328
      %vm288 = vsmask.f32 7440
      %vm289 = vmor %vm287, %vm288
      %v291 = vshrl.u32 %v263, 16
      %v293 = vrot.slane %v291, 4
      %v294 = vshll.u32 %v263, 16
      %v296 = vrot.slane %v294, 5
      %v297 = vor.u32 %v293, %v296
      %v298 = vrot.slane %v297, 4
      %v300 = vshll.u32 %v264, 16
      %v302 = vrot.slane %v300, 5
      %v303 = vsel %vm289, %v298, %v302
      %v304 = vshrl.u32 %v264, 16
      %v306 = vrot.slane %v304, 4
      %v307 = vor.u32 %v306, %v302
      %v308 = vrot.slane %v307, 4
      %v310 = vshll.u32 %v265, 16
      %v312 = vrot.slane %v310, 5
      %v313 = vsel %vm289, %v308, %v312
      %v315 = vshrl.u32 %v266, 16
      %v317 = vrot.slane %v315, 4
      %v318 = vshll.u32 %v266, 16
      %v320 = vrot.slane %v318, 5
      %v321 = vor.u32 %v317, %v320
      %v322 = vrot.slane %v321, 4
      %v324 = vshll.u32 %v267, 16
      %v326 = vrot.slane %v324, 5
      %v327 = vsel %vm289, %v322, %v326
      %v328 = vshrl.u32 %v267, 16
      %v330 = vrot.slane %v328, 4
      %v331 = vor.u32 %v330, %v326
      %v332 = vrot.slane %v331, 4
      %v334 = vshll.u32 %v268, 16
      %v336 = vrot.slane %v334, 5
      %v337 = vsel %vm289, %v332, %v336
      %v339 = vshrl.u32 %v269, 16
      %v341 = vrot.slane %v339, 4
      %v342 = vshll.u32 %v269, 16
      %v344 = vrot.slane %v342, 5
      %v345 = vor.u32 %v341, %v344
      %v346 = vrot.slane %v345, 4
      %v348 = vshll.u32 %v270, 16
      %v350 = vrot.slane %v348, 5
      %v351 = vsel %vm289, %v346, %v350
      %v352 = vshrl.u32 %v270, 16
      %v354 = vrot.slane %v352, 4
      %v355 = vor.u32 %v354, %v350
      %v356 = vrot.slane %v355, 4
      %v358 = vshll.u32 %v271, 16
      %v360 = vrot.slane %v358, 5
      %v361 = vsel %vm289, %v356, %v360
      %v363 = vshrl.u32 %v272, 16
      %v365 = vrot.slane %v363, 4
      %v366 = vshll.u32 %v272, 16
      %v368 = vrot.slane %v366, 5
      %v369 = vor.u32 %v365, %v368
      %v370 = vrot.slane %v369, 4
      %v372 = vshll.u32 %v273, 16
      %v374 = vrot.slane %v372, 5
      %v375 = vsel %vm289, %v370, %v374
      %v376 = vshrl.u32 %v273, 16
      %v378 = vrot.slane %v376, 4
      %v379 = vor.u32 %v378, %v374
      %v380 = vrot.slane %v379, 4
      %v382 = vshll.u32 %v274, 16
      %v384 = vrot.slane %v382, 5
      %v385 = vsel %vm289, %v380, %v384
      %v387 = vshrl.u32 %v275, 16
      %v389 = vrot.slane %v387, 4
      %v390 = vshll.u32 %v275, 16
      %v392 = vrot.slane %v390, 5
      %v393 = vor.u32 %v389, %v392
      %v394 = vrot.slane %v393, 4
      %v396 = vshll.u32 %v276, 16
      %v398 = vrot.slane %v396, 5
      %v399 = vsel %vm289, %v394, %v398
      %v400 = vshrl.u32 %v276, 16
      %v402 = vrot.slane %v400, 4
      %v403 = vor.u32 %v402, %v398
      %v404 = vrot.slane %v403, 4
      %v406 = vshll.u32 %v277, 16
      %v408 = vrot.slane %v406, 5
      %v409 = vsel %vm289, %v404, %v408
      %v411 = vshrl.u32 %v278, 16
      %v413 = vrot.slane %v411, 4
      %v414 = vshll.u32 %v278, 16
      %v416 = vrot.slane %v414, 5
      %v417 = vor.u32 %v413, %v416
      %v418 = vrot.slane %v417, 4
      %v420 = vshll.u32 %v279, 16
      %v422 = vrot.slane %v420, 5
      %v423 = vsel %vm289, %v418, %v422
      %v424 = vshrl.u32 %v279, 16
      %v426 = vrot.slane %v424, 4
      %v427 = vor.u32 %v426, %v422
      %v428 = vrot.slane %v427, 4
      %v430 = vshll.u32 %v280, 16
      %v432 = vrot.slane %v430, 5
      %v433 = vsel %vm289, %v428, %v432
      %v435 = vshrl.u32 %v281, 16
      %v437 = vrot.slane %v435, 4
      %v438 = vshll.u32 %v281, 16
      %v440 = vrot.slane %v438, 5
      %v441 = vor.u32 %v437, %v440
      %v442 = vrot.slane %v441, 4
      %v444 = vshll.u32 %v282, 16
      %v446 = vrot.slane %v444, 5
      %v447 = vsel %vm289, %v442, %v446
      %v448 = vshrl.u32 %v282, 16
      %v450 = vrot.slane %v448, 4
      %v451 = vor.u32 %v450, %v446
      %v452 = vrot.slane %v451, 4
      %v454 = vshll.u32 %v283, 16
      %v456 = vrot.slane %v454, 5
      %v457 = vsel %vm289, %v452, %v456
      %v459 = vshrl.u32 %v284, 16
      %v461 = vrot.slane %v459, 4
      %v462 = vshll.u32 %v284, 16
      %v464 = vrot.slane %v462, 5
      %v465 = vor.u32 %v461, %v464
      %v466 = vrot.slane %v465, 4
      %v468 = vshll.u32 %v285, 16
      %v470 = vrot.slane %v468, 5
      %v471 = vsel %vm289, %v466, %v470
      %v472 = vshrl.u32 %v285, 16
      %v474 = vrot.slane %v472, 4
      %v475 = vor.u32 %v474, %v470
      %v476 = vrot.slane %v475, 4
      %v478 = vshll.u32 %v286, 16
      %v480 = vrot.slane %v478, 5
      %v481 = vsel %vm289, %v476, %v480
      %482 = vrot.lane.b32.xlu0 %v303, 4
      %v483 = vpop.permute.xlu0 %482
      %484 = vrot.lane.b32.xlu0 %v313, 4
      %v485 = vpop.permute.xlu0 %484
      %486 = vrot.lane.b32.xlu0 %v327, 4
      %v487 = vpop.permute.xlu0 %486
      %488 = vrot.lane.b32.xlu0 %v337, 4
      %v489 = vpop.permute.xlu0 %488
      %490 = vrot.lane.b32.xlu0 %v351, 4
      %v491 = vpop.permute.xlu0 %490
      %492 = vrot.lane.b32.xlu0 %v361, 4
      %v493 = vpop.permute.xlu0 %492
      %494 = vrot.lane.b32.xlu0 %v375, 4
      %v495 = vpop.permute.xlu0 %494
      %496 = vrot.lane.b32.xlu0 %v385, 4
      %v497 = vpop.permute.xlu0 %496
      %498 = vrot.lane.b32.xlu0 %v399, 4
      %v499 = vpop.permute.xlu0 %498
      %500 = vrot.lane.b32.xlu0 %v409, 4
      %v501 = vpop.permute.xlu0 %500
      %502 = vrot.lane.b32.xlu0 %v423, 4
      %v503 = vpop.permute.xlu0 %502
      %504 = vrot.lane.b32.xlu0 %v433, 4
      %v505 = vpop.permute.xlu0 %504
      %506 = vrot.lane.b32.xlu0 %v447, 4
      %v507 = vpop.permute.xlu0 %506
      %508 = vrot.lane.b32.xlu0 %v457, 4
      %v509 = vpop.permute.xlu0 %508
      %510 = vrot.lane.b32.xlu0 %v471, 4
      %v511 = vpop.permute.xlu0 %510
      %512 = vrot.lane.b32.xlu0 %v481, 4
      %v513 = vpop.permute.xlu0 %512
      %vm530 = vcmask 60448
      %531 = vst.msk [vmem:[#allocation2] sm:$0xf] %vm530, %v483
      %532 = vst.msk [vmem:[#allocation2 + $0x4] sm:$0xf] %vm530, %v485
      %533 = vst.msk [vmem:[#allocation2 + $0x8] sm:$0xf] %vm530, %v487
      %534 = vst.msk [vmem:[#allocation2 + $0xc] sm:$0xf] %vm530, %v489
      %535 = vst.msk [vmem:[#allocation2 + $0x10] sm:$0xf] %vm530, %v491
      %536 = vst.msk [vmem:[#allocation2 + $0x14] sm:$0xf] %vm530, %v493
      %537 = vst.msk [vmem:[#allocation2 + $0x18] sm:$0xf] %vm530, %v495
      %538 = vst.msk [vmem:[#allocation2 + $0x1c] sm:$0xf] %vm530, %v497
      %539 = vst.msk [vmem:[#allocation2 + $0x20] sm:$0xf] %vm530, %v499
      %540 = vst.msk [vmem:[#allocation2 + $0x24] sm:$0xf] %vm530, %v501
      %541 = vst.msk [vmem:[#allocation2 + $0x28] sm:$0xf] %vm530, %v503
      %542 = vst.msk [vmem:[#allocation2 + $0x2c] sm:$0xf] %vm530, %v505
      %543 = vst.msk [vmem:[#allocation2 + $0x30] sm:$0xf] %vm530, %v507
      %544 = vst.msk [vmem:[#allocation2 + $0x34] sm:$0xf] %vm530, %v509
      %545 = vst.msk [vmem:[#allocation2 + $0x38] sm:$0xf] %vm530, %v511
      %546 = vst.msk [vmem:[#allocation2 + $0x3c] sm:$0xf] %vm530, %v513
      %v547 = vld [vmem:[%s208] sm:$0xe]
      %v548 = vld [vmem:[%s208 + $0x4] sm:$0xf]
      %v549 = vld [vmem:[%s208 + $0x8] sm:$0x1]
      %v550 = vld [vmem:[%s208 + $0xc] sm:$0xe]
      %v551 = vld [vmem:[%s208 + $0x10] sm:$0xf]
      %v552 = vld [vmem:[%s208 + $0x14] sm:$0x1]
      %v553 = vld [vmem:[%s208 + $0x18] sm:$0xe]
      %v554 = vld [vmem:[%s208 + $0x1c] sm:$0xf]
      %v555 = vld [vmem:[%s208 + $0x20] sm:$0x1]
      %v556 = vld [vmem:[%s208 + $0x24] sm:$0xe]
      %v557 = vld [vmem:[%s208 + $0x28] sm:$0xf]
      %v558 = vld [vmem:[%s208 + $0x2c] sm:$0x1]
      %v559 = vld [vmem:[%s208 + $0x30] sm:$0xe]
      %v560 = vld [vmem:[%s208 + $0x34] sm:$0xf]
      %v561 = vld [vmem:[%s208 + $0x38] sm:$0x1]
      %v562 = vld [vmem:[%s208 + $0x3c] sm:$0xe]
      %v563 = vld [vmem:[%s208 + $0x40] sm:$0xf]
      %v564 = vld [vmem:[%s208 + $0x44] sm:$0x1]
      %v565 = vld [vmem:[%s208 + $0x48] sm:$0xe]
      %v566 = vld [vmem:[%s208 + $0x4c] sm:$0xf]
      %v567 = vld [vmem:[%s208 + $0x50] sm:$0x1]
      %v568 = vld [vmem:[%s208 + $0x54] sm:$0xe]
      %v569 = vld [vmem:[%s208 + $0x58] sm:$0xf]
      %v570 = vld [vmem:[%s208 + $0x5c] sm:$0x1]
      %vm595 = vcmask 1042432
      %vm596 = vcmask 1046532
      %vm597 = vmor %vm595, %vm596
      %v598 = vrot.slane %v547, 5
      %v599 = vrot.slane %v598, 4
      %v600 = vrot.slane %v548, 5
      %v601 = vsel %vm597, %v599, %v600
      %v602 = vrot.slane %v600, 4
      %v603 = vrot.slane %v549, 5
      %v604 = vsel %vm597, %v602, %v603
      %v605 = vrot.slane %v550, 5
      %v606 = vrot.slane %v605, 4
      %v607 = vrot.slane %v551, 5
      %v608 = vsel %vm597, %v606, %v607
      %v609 = vrot.slane %v607, 4
      %v610 = vrot.slane %v552, 5
      %v611 = vsel %vm597, %v609, %v610
      %v612 = vrot.slane %v553, 5
      %v613 = vrot.slane %v612, 4
      %v614 = vrot.slane %v554, 5
      %v615 = vsel %vm597, %v613, %v614
      %v616 = vrot.slane %v614, 4
      %v617 = vrot.slane %v555, 5
      %v618 = vsel %vm597, %v616, %v617
      %v619 = vrot.slane %v556, 5
      %v620 = vrot.slane %v619, 4
      %v621 = vrot.slane %v557, 5
      %v622 = vsel %vm597, %v620, %v621
      %v623 = vrot.slane %v621, 4
      %v624 = vrot.slane %v558, 5
      %v625 = vsel %vm597, %v623, %v624
      %v626 = vrot.slane %v559, 5
      %v627 = vrot.slane %v626, 4
      %v628 = vrot.slane %v560, 5
      %v629 = vsel %vm597, %v627, %v628
      %v630 = vrot.slane %v628, 4
      %v631 = vrot.slane %v561, 5
      %v632 = vsel %vm597, %v630, %v631
      %v633 = vrot.slane %v562, 5
      %v634 = vrot.slane %v633, 4
      %v635 = vrot.slane %v563, 5
      %v636 = vsel %vm597, %v634, %v635
      %v637 = vrot.slane %v635, 4
      %v638 = vrot.slane %v564, 5
      %v639 = vsel %vm597, %v637, %v638
      %v640 = vrot.slane %v565, 5
      %v641 = vrot.slane %v640, 4
      %v642 = vrot.slane %v566, 5
      %v643 = vsel %vm597, %v641, %v642
      %v644 = vrot.slane %v642, 4
      %v645 = vrot.slane %v567, 5
      %v646 = vsel %vm597, %v644, %v645
      %v647 = vrot.slane %v568, 5
      %v648 = vrot.slane %v647, 4
      %v649 = vrot.slane %v569, 5
      %v650 = vsel %vm597, %v648, %v649
      %v651 = vrot.slane %v649, 4
      %v652 = vrot.slane %v570, 5
      %v653 = vsel %vm597, %v651, %v652
      %654 = vrot.lane.b32.xlu0 %v601, 8
      %v655 = vpop.permute.xlu0 %654
      %656 = vrot.lane.b32.xlu0 %v604, 8
      %v657 = vpop.permute.xlu0 %656
      %658 = vrot.lane.b32.xlu0 %v608, 8
      %v659 = vpop.permute.xlu0 %658
      %660 = vrot.lane.b32.xlu0 %v611, 8
      %v661 = vpop.permute.xlu0 %660
      %662 = vrot.lane.b32.xlu0 %v615, 8
      %v663 = vpop.permute.xlu0 %662
      %664 = vrot.lane.b32.xlu0 %v618, 8
      %v665 = vpop.permute.xlu0 %664
      %666 = vrot.lane.b32.xlu0 %v622, 8
      %v667 = vpop.permute.xlu0 %666
      %668 = vrot.lane.b32.xlu0 %v625, 8
      %v669 = vpop.permute.xlu0 %668
      %670 = vrot.lane.b32.xlu0 %v629, 8
      %v671 = vpop.permute.xlu0 %670
      %672 = vrot.lane.b32.xlu0 %v632, 8
      %v673 = vpop.permute.xlu0 %672
      %674 = vrot.lane.b32.xlu0 %v636, 8
      %v675 = vpop.permute.xlu0 %674
      %676 = vrot.lane.b32.xlu0 %v639, 8
      %v677 = vpop.permute.xlu0 %676
      %678 = vrot.lane.b32.xlu0 %v643, 8
      %v679 = vpop.permute.xlu0 %678
      %680 = vrot.lane.b32.xlu0 %v646, 8
      %v681 = vpop.permute.xlu0 %680
      %682 = vrot.lane.b32.xlu0 %v650, 8
      %v683 = vpop.permute.xlu0 %682
      %684 = vrot.lane.b32.xlu0 %v653, 8
      %v685 = vpop.permute.xlu0 %684
      %vm702 = vcmask 93248
      %703 = vst.msk [vmem:[#allocation2] sm:$0xf] %vm702, %v655
      %704 = vst.msk [vmem:[#allocation2 + $0x4] sm:$0xf] %vm702, %v657
      %705 = vst.msk [vmem:[#allocation2 + $0x8] sm:$0xf] %vm702, %v659
      %706 = vst.msk [vmem:[#allocation2 + $0xc] sm:$0xf] %vm702, %v661
      %707 = vst.msk [vmem:[#allocation2 + $0x10] sm:$0xf] %vm702, %v663
      %708 = vst.msk [vmem:[#allocation2 + $0x14] sm:$0xf] %vm702, %v665
      %709 = vst.msk [vmem:[#allocation2 + $0x18] sm:$0xf] %vm702, %v667
      %710 = vst.msk [vmem:[#allocation2 + $0x1c] sm:$0xf] %vm702, %v669
      %711 = vst.msk [vmem:[#allocation2 + $0x20] sm:$0xf] %vm702, %v671
      %712 = vst.msk [vmem:[#allocation2 + $0x24] sm:$0xf] %vm702, %v673
      %713 = vst.msk [vmem:[#allocation2 + $0x28] sm:$0xf] %vm702, %v675
      %714 = vst.msk [vmem:[#allocation2 + $0x2c] sm:$0xf] %vm702, %v677
      %715 = vst.msk [vmem:[#allocation2 + $0x30] sm:$0xf] %vm702, %v679
      %716 = vst.msk [vmem:[#allocation2 + $0x34] sm:$0xf] %vm702, %v681
      %717 = vst.msk [vmem:[#allocation2 + $0x38] sm:$0xf] %vm702, %v683
      %718 = vst.msk [vmem:[#allocation2 + $0x3c] sm:$0xf] %vm702, %v685
      %s719 = scalar_lea.vmem %s208, 12
      %v720 = vld [vmem:[%s719] sm:$0xf]
      %v721 = vld [vmem:[%s719 + $0x4] sm:$0xf]
      %v722 = vld [vmem:[%s719 + $0xc] sm:$0xf]
      %v723 = vld [vmem:[%s719 + $0x10] sm:$0xf]
      %v724 = vld [vmem:[%s719 + $0x18] sm:$0xf]
      %v725 = vld [vmem:[%s719 + $0x1c] sm:$0xf]
      %v726 = vld [vmem:[%s719 + $0x24] sm:$0xf]
      %v727 = vld [vmem:[%s719 + $0x28] sm:$0xf]
      %v728 = vld [vmem:[%s719 + $0x30] sm:$0xf]
      %v729 = vld [vmem:[%s719 + $0x34] sm:$0xf]
      %v730 = vld [vmem:[%s719 + $0x3c] sm:$0xf]
      %v731 = vld [vmem:[%s719 + $0x40] sm:$0xf]
      %v732 = vld [vmem:[%s719 + $0x48] sm:$0xf]
      %v733 = vld [vmem:[%s719 + $0x4c] sm:$0xf]
      %v734 = vld [vmem:[%s719 + $0x54] sm:$0xf]
      %v735 = vld [vmem:[%s719 + $0x58] sm:$0xf]
      %752 = vrot.lane.b32.xlu0 %v720, 12
      %v753 = vpop.permute.xlu0 %752
      %754 = vrot.lane.b32.xlu0 %v721, 12
      %v755 = vpop.permute.xlu0 %754
      %756 = vrot.lane.b32.xlu0 %v722, 12
      %v757 = vpop.permute.xlu0 %756
      %758 = vrot.lane.b32.xlu0 %v723, 12
      %v759 = vpop.permute.xlu0 %758
      %760 = vrot.lane.b32.xlu0 %v724, 12
      %v761 = vpop.permute.xlu0 %760
      %762 = vrot.lane.b32.xlu0 %v725, 12
      %v763 = vpop.permute.xlu0 %762
      %764 = vrot.lane.b32.xlu0 %v726, 12
      %v765 = vpop.permute.xlu0 %764
      %766 = vrot.lane.b32.xlu0 %v727, 12
      %v767 = vpop.permute.xlu0 %766
      %768 = vrot.lane.b32.xlu0 %v728, 12
      %v769 = vpop.permute.xlu0 %768
      %770 = vrot.lane.b32.xlu0 %v729, 12
      %v771 = vpop.permute.xlu0 %770
      %772 = vrot.lane.b32.xlu0 %v730, 12
      %v773 = vpop.permute.xlu0 %772
      %774 = vrot.lane.b32.xlu0 %v731, 12
      %v775 = vpop.permute.xlu0 %774
      %776 = vrot.lane.b32.xlu0 %v732, 12
      %v777 = vpop.permute.xlu0 %776
      %778 = vrot.lane.b32.xlu0 %v733, 12
      %v779 = vpop.permute.xlu0 %778
      %780 = vrot.lane.b32.xlu0 %v734, 12
      %v781 = vpop.permute.xlu0 %780
      %782 = vrot.lane.b32.xlu0 %v735, 12
      %v783 = vpop.permute.xlu0 %782
      %vm800 = vcmask 126048
      %801 = vst.msk [vmem:[#allocation2] sm:$0xf] %vm800, %v753
      %802 = vst.msk [vmem:[#allocation2 + $0x4] sm:$0xf] %vm800, %v755
      %803 = vst.msk [vmem:[#allocation2 + $0x8] sm:$0xf] %vm800, %v757
      %804 = vst.msk [vmem:[#allocation2 + $0xc] sm:$0xf] %vm800, %v759
      %805 = vst.msk [vmem:[#allocation2 + $0x10] sm:$0xf] %vm800, %v761
      %806 = vst.msk [vmem:[#allocation2 + $0x14] sm:$0xf] %vm800, %v763
      %807 = vst.msk [vmem:[#allocation2 + $0x18] sm:$0xf] %vm800, %v765
      %808 = vst.msk [vmem:[#allocation2 + $0x1c] sm:$0xf] %vm800, %v767
      %809 = vst.msk [vmem:[#allocation2 + $0x20] sm:$0xf] %vm800, %v769
      %810 = vst.msk [vmem:[#allocation2 + $0x24] sm:$0xf] %vm800, %v771
      %811 = vst.msk [vmem:[#allocation2 + $0x28] sm:$0xf] %vm800, %v773
      %812 = vst.msk [vmem:[#allocation2 + $0x2c] sm:$0xf] %vm800, %v775
      %813 = vst.msk [vmem:[#allocation2 + $0x30] sm:$0xf] %vm800, %v777
      %814 = vst.msk [vmem:[#allocation2 + $0x34] sm:$0xf] %vm800, %v779
      %815 = vst.msk [vmem:[#allocation2 + $0x38] sm:$0xf] %vm800, %v781
      %816 = vst.msk [vmem:[#allocation2 + $0x3c] sm:$0xf] %vm800, %v783
      %v817 = vld [vmem:[%s719] sm:$0xf]
      %v818 = vld [vmem:[%s719 + $0x4] sm:$0xf]
      %v819 = vld [vmem:[%s719 + $0x8] sm:$0x1]
      %v820 = vld [vmem:[%s719 + $0xc] sm:$0xf]
      %v821 = vld [vmem:[%s719 + $0x10] sm:$0xf]
      %v822 = vld [vmem:[%s719 + $0x14] sm:$0x1]
      %v823 = vld [vmem:[%s719 + $0x18] sm:$0xf]
      %v824 = vld [vmem:[%s719 + $0x1c] sm:$0xf]
      %v825 = vld [vmem:[%s719 + $0x20] sm:$0x1]
      %v826 = vld [vmem:[%s719 + $0x24] sm:$0xf]
      %v827 = vld [vmem:[%s719 + $0x28] sm:$0xf]
      %v828 = vld [vmem:[%s719 + $0x2c] sm:$0x1]
      %v829 = vld [vmem:[%s719 + $0x30] sm:$0xf]
      %v830 = vld [vmem:[%s719 + $0x34] sm:$0xf]
      %v831 = vld [vmem:[%s719 + $0x38] sm:$0x1]
      %v832 = vld [vmem:[%s719 + $0x3c] sm:$0xf]
      %v833 = vld [vmem:[%s719 + $0x40] sm:$0xf]
      %v834 = vld [vmem:[%s719 + $0x44] sm:$0x1]
      %v835 = vld [vmem:[%s719 + $0x48] sm:$0xf]
      %v836 = vld [vmem:[%s719 + $0x4c] sm:$0xf]
      %v837 = vld [vmem:[%s719 + $0x50] sm:$0x1]
      %v838 = vld [vmem:[%s719 + $0x54] sm:$0xf]
      %v839 = vld [vmem:[%s719 + $0x58] sm:$0xf]
      %v840 = vld [vmem:[%s719 + $0x5c] sm:$0x1]
      %v842 = vshrl.u32 %v817, 16
      %v844 = vrot.slane %v842, 4
      %v845 = vshll.u32 %v817, 16
      %v847 = vrot.slane %v845, 5
      %v848 = vor.u32 %v844, %v847
      %v849 = vrot.slane %v848, 4
      %v851 = vshll.u32 %v818, 16
      %v853 = vrot.slane %v851, 5
      %v854 = vsel %vm289, %v849, %v853
      %v855 = vshrl.u32 %v818, 16
      %v857 = vrot.slane %v855, 4
      %v858 = vor.u32 %v857, %v853
      %v859 = vrot.slane %v858, 4
      %v861 = vshll.u32 %v819, 16
      %v863 = vrot.slane %v861, 5
      %v864 = vsel %vm289, %v859, %v863
      %v866 = vshrl.u32 %v820, 16
      %v868 = vrot.slane %v866, 4
      %v869 = vshll.u32 %v820, 16
      %v871 = vrot.slane %v869, 5
      %v872 = vor.u32 %v868, %v871
      %v873 = vrot.slane %v872, 4
      %v875 = vshll.u32 %v821, 16
      %v877 = vrot.slane %v875, 5
      %v878 = vsel %vm289, %v873, %v877
      %v879 = vshrl.u32 %v821, 16
      %v881 = vrot.slane %v879, 4
      %v882 = vor.u32 %v881, %v877
      %v883 = vrot.slane %v882, 4
      %v885 = vshll.u32 %v822, 16
      %v887 = vrot.slane %v885, 5
      %v888 = vsel %vm289, %v883, %v887
      %v890 = vshrl.u32 %v823, 16
      %v892 = vrot.slane %v890, 4
      %v893 = vshll.u32 %v823, 16
      %v895 = vrot.slane %v893, 5
      %v896 = vor.u32 %v892, %v895
      %v897 = vrot.slane %v896, 4
      %v899 = vshll.u32 %v824, 16
      %v901 = vrot.slane %v899, 5
      %v902 = vsel %vm289, %v897, %v901
      %v903 = vshrl.u32 %v824, 16
      %v905 = vrot.slane %v903, 4
      %v906 = vor.u32 %v905, %v901
      %v907 = vrot.slane %v906, 4
      %v909 = vshll.u32 %v825, 16
      %v911 = vrot.slane %v909, 5
      %v912 = vsel %vm289, %v907, %v911
      %v914 = vshrl.u32 %v826, 16
      %v916 = vrot.slane %v914, 4
      %v917 = vshll.u32 %v826, 16
      %v919 = vrot.slane %v917, 5
      %v920 = vor.u32 %v916, %v919
      %v921 = vrot.slane %v920, 4
      %v923 = vshll.u32 %v827, 16
      %v925 = vrot.slane %v923, 5
      %v926 = vsel %vm289, %v921, %v925
      %v927 = vshrl.u32 %v827, 16
      %v929 = vrot.slane %v927, 4
      %v930 = vor.u32 %v929, %v925
      %v931 = vrot.slane %v930, 4
      %v933 = vshll.u32 %v828, 16
      %v935 = vrot.slane %v933, 5
      %v936 = vsel %vm289, %v931, %v935
      %v938 = vshrl.u32 %v829, 16
      %v940 = vrot.slane %v938, 4
      %v941 = vshll.u32 %v829, 16
      %v943 = vrot.slane %v941, 5
      %v944 = vor.u32 %v940, %v943
      %v945 = vrot.slane %v944, 4
      %v947 = vshll.u32 %v830, 16
      %v949 = vrot.slane %v947, 5
      %v950 = vsel %vm289, %v945, %v949
      %v951 = vshrl.u32 %v830, 16
      %v953 = vrot.slane %v951, 4
      %v954 = vor.u32 %v953, %v949
      %v955 = vrot.slane %v954, 4
      %v957 = vshll.u32 %v831, 16
      %v959 = vrot.slane %v957, 5
      %v960 = vsel %vm289, %v955, %v959
      %v962 = vshrl.u32 %v832, 16
      %v964 = vrot.slane %v962, 4
      %v965 = vshll.u32 %v832, 16
      %v967 = vrot.slane %v965, 5
      %v968 = vor.u32 %v964, %v967
      %v969 = vrot.slane %v968, 4
      %v971 = vshll.u32 %v833, 16
      %v973 = vrot.slane %v971, 5
      %v974 = vsel %vm289, %v969, %v973
      %v975 = vshrl.u32 %v833, 16
      %v977 = vrot.slane %v975, 4
      %v978 = vor.u32 %v977, %v973
      %v979 = vrot.slane %v978, 4
      %v981 = vshll.u32 %v834, 16
      %v983 = vrot.slane %v981, 5
      %v984 = vsel %vm289, %v979, %v983
      %v986 = vshrl.u32 %v835, 16
      %v988 = vrot.slane %v986, 4
      %v989 = vshll.u32 %v835, 16
      %v991 = vrot.slane %v989, 5
      %v992 = vor.u32 %v988, %v991
      %v993 = vrot.slane %v992, 4
      %v995 = vshll.u32 %v836, 16
      %v997 = vrot.slane %v995, 5
      %v998 = vsel %vm289, %v993, %v997
      %v999 = vshrl.u32 %v836, 16
      %v1001 = vrot.slane %v999, 4
      %v1002 = vor.u32 %v1001, %v997
      %v1003 = vrot.slane %v1002, 4
      %v1005 = vshll.u32 %v837, 16
      %v1007 = vrot.slane %v1005, 5
      %v1008 = vsel %vm289, %v1003, %v1007
      %v1010 = vshrl.u32 %v838, 16
      %v1012 = vrot.slane %v1010, 4
      %v1013 = vshll.u32 %v838, 16
      %v1015 = vrot.slane %v1013, 5
      %v1016 = vor.u32 %v1012, %v1015
      %v1017 = vrot.slane %v1016, 4
      %v1019 = vshll.u32 %v839, 16
      %v1021 = vrot.slane %v1019, 5
      %v1022 = vsel %vm289, %v1017, %v1021
      %v1023 = vshrl.u32 %v839, 16
      %v1025 = vrot.slane %v1023, 4
      %v1026 = vor.u32 %v1025, %v1021
      %v1027 = vrot.slane %v1026, 4
      %v1029 = vshll.u32 %v840, 16
      %v1031 = vrot.slane %v1029, 5
      %v1032 = vsel %vm289, %v1027, %v1031
      %1033 = vrot.lane.b32.xlu0 %v854, 16
      %v1034 = vpop.permute.xlu0 %1033
      %1035 = vrot.lane.b32.xlu0 %v864, 16
      %v1036 = vpop.permute.xlu0 %1035
      %1037 = vrot.lane.b32.xlu0 %v878, 16
      %v1038 = vpop.permute.xlu0 %1037
      %1039 = vrot.lane.b32.xlu0 %v888, 16
      %v1040 = vpop.permute.xlu0 %1039
      %1041 = vrot.lane.b32.xlu0 %v902, 16
      %v1042 = vpop.permute.xlu0 %1041
      %1043 = vrot.lane.b32.xlu0 %v912, 16
      %v1044 = vpop.permute.xlu0 %1043
      %1045 = vrot.lane.b32.xlu0 %v926, 16
      %v1046 = vpop.permute.xlu0 %1045
      %1047 = vrot.lane.b32.xlu0 %v936, 16
      %v1048 = vpop.permute.xlu0 %1047
      %1049 = vrot.lane.b32.xlu0 %v950, 16
      %v1050 = vpop.permute.xlu0 %1049
      %1051 = vrot.lane.b32.xlu0 %v960, 16
      %v1052 = vpop.permute.xlu0 %1051
      %1053 = vrot.lane.b32.xlu0 %v974, 16
      %v1054 = vpop.permute.xlu0 %1053
      %1055 = vrot.lane.b32.xlu0 %v984, 16
      %v1056 = vpop.permute.xlu0 %1055
      %1057 = vrot.lane.b32.xlu0 %v998, 16
      %v1058 = vpop.permute.xlu0 %1057
      %1059 = vrot.lane.b32.xlu0 %v1008, 16
      %v1060 = vpop.permute.xlu0 %1059
      %1061 = vrot.lane.b32.xlu0 %v1022, 16
      %v1062 = vpop.permute.xlu0 %1061
      %1063 = vrot.lane.b32.xlu0 %v1032, 16
      %v1064 = vpop.permute.xlu0 %1063
      %vm1081 = vcmask 158848
      %1082 = vst.msk [vmem:[#allocation2] sm:$0xf] %vm1081, %v1034
      %1083 = vst.msk [vmem:[#allocation2 + $0x4] sm:$0xf] %vm1081, %v1036
      %1084 = vst.msk [vmem:[#allocation2 + $0x8] sm:$0xf] %vm1081, %v1038
      %1085 = vst.msk [vmem:[#allocation2 + $0xc] sm:$0xf] %vm1081, %v1040
      %1086 = vst.msk [vmem:[#allocation2 + $0x10] sm:$0xf] %vm1081, %v1042
      %1087 = vst.msk [vmem:[#allocation2 + $0x14] sm:$0xf] %vm1081, %v1044
      %1088 = vst.msk [vmem:[#allocation2 + $0x18] sm:$0xf] %vm1081, %v1046
      %1089 = vst.msk [vmem:[#allocation2 + $0x1c] sm:$0xf] %vm1081, %v1048
      %1090 = vst.msk [vmem:[#allocation2 + $0x20] sm:$0xf] %vm1081, %v1050
      %1091 = vst.msk [vmem:[#allocation2 + $0x24] sm:$0xf] %vm1081, %v1052
      %1092 = vst.msk [vmem:[#allocation2 + $0x28] sm:$0xf] %vm1081, %v1054
      %1093 = vst.msk [vmem:[#allocation2 + $0x2c] sm:$0xf] %vm1081, %v1056
      %1094 = vst.msk [vmem:[#allocation2 + $0x30] sm:$0xf] %vm1081, %v1058
      %1095 = vst.msk [vmem:[#allocation2 + $0x34] sm:$0xf] %vm1081, %v1060
      %1096 = vst.msk [vmem:[#allocation2 + $0x38] sm:$0xf] %vm1081, %v1062
      %1097 = vst.msk [vmem:[#allocation2 + $0x3c] sm:$0xf] %vm1081, %v1064
      %v1098 = vld [vmem:[%s719] sm:$0xe]
      %v1099 = vld [vmem:[%s719 + $0x4] sm:$0xf]
      %v1100 = vld [vmem:[%s719 + $0x8] sm:$0x1]
      %v1101 = vld [vmem:[%s719 + $0xc] sm:$0xe]
      %v1102 = vld [vmem:[%s719 + $0x10] sm:$0xf]
      %v1103 = vld [vmem:[%s719 + $0x14] sm:$0x1]
      %v1104 = vld [vmem:[%s719 + $0x18] sm:$0xe]
      %v1105 = vld [vmem:[%s719 + $0x1c] sm:$0xf]
      %v1106 = vld [vmem:[%s719 + $0x20] sm:$0x1]
      %v1107 = vld [vmem:[%s719 + $0x24] sm:$0xe]
      %v1108 = vld [vmem:[%s719 + $0x28] sm:$0xf]
      %v1109 = vld [vmem:[%s719 + $0x2c] sm:$0x1]
      %v1110 = vld [vmem:[%s719 + $0x30] sm:$0xe]
      %v1111 = vld [vmem:[%s719 + $0x34] sm:$0xf]
      %v1112 = vld [vmem:[%s719 + $0x38] sm:$0x1]
      %v1113 = vld [vmem:[%s719 + $0x3c] sm:$0xe]
      %v1114 = vld [vmem:[%s719 + $0x40] sm:$0xf]
      %v1115 = vld [vmem:[%s719 + $0x44] sm:$0x1]
      %v1116 = vld [vmem:[%s719 + $0x48] sm:$0xe]
      %v1117 = vld [vmem:[%s719 + $0x4c] sm:$0xf]
      %v1118 = vld [vmem:[%s719 + $0x50] sm:$0x1]
      %v1119 = vld [vmem:[%s719 + $0x54] sm:$0xe]
      %v1120 = vld [vmem:[%s719 + $0x58] sm:$0xf]
      %v1121 = vld [vmem:[%s719 + $0x5c] sm:$0x1]
      %v1146 = vrot.slane %v1098, 5
      %v1147 = vrot.slane %v1146, 4
      %v1148 = vrot.slane %v1099, 5
      %v1149 = vsel %vm597, %v1147, %v1148
      %v1150 = vrot.slane %v1148, 4
      %v1151 = vrot.slane %v1100, 5
      %v1152 = vsel %vm597, %v1150, %v1151
      %v1153 = vrot.slane %v1101, 5
      %v1154 = vrot.slane %v1153, 4
      %v1155 = vrot.slane %v1102, 5
      %v1156 = vsel %vm597, %v1154, %v1155
      %v1157 = vrot.slane %v1155, 4
      %v1158 = vrot.slane %v1103, 5
      %v1159 = vsel %vm597, %v1157, %v1158
      %v1160 = vrot.slane %v1104, 5
      %v1161 = vrot.slane %v1160, 4
      %v1162 = vrot.slane %v1105, 5
      %v1163 = vsel %vm597, %v1161, %v1162
      %v1164 = vrot.slane %v1162, 4
      %v1165 = vrot.slane %v1106, 5
      %v1166 = vsel %vm597, %v1164, %v1165
      %v1167 = vrot.slane %v1107, 5
      %v1168 = vrot.slane %v1167, 4
      %v1169 = vrot.slane %v1108, 5
      %v1170 = vsel %vm597, %v1168, %v1169
      %v1171 = vrot.slane %v1169, 4
      %v1172 = vrot.slane %v1109, 5
      %v1173 = vsel %vm597, %v1171, %v1172
      %v1174 = vrot.slane %v1110, 5
      %v1175 = vrot.slane %v1174, 4
      %v1176 = vrot.slane %v1111, 5
      %v1177 = vsel %vm597, %v1175, %v1176
      %v1178 = vrot.slane %v1176, 4
      %v1179 = vrot.slane %v1112, 5
      %v1180 = vsel %vm597, %v1178, %v1179
      %v1181 = vrot.slane %v1113, 5
      %v1182 = vrot.slane %v1181, 4
      %v1183 = vrot.slane %v1114, 5
      %v1184 = vsel %vm597, %v1182, %v1183
      %v1185 = vrot.slane %v1183, 4
      %v1186 = vrot.slane %v1115, 5
      %v1187 = vsel %vm597, %v1185, %v1186
      %v1188 = vrot.slane %v1116, 5
      %v1189 = vrot.slane %v1188, 4
      %v1190 = vrot.slane %v1117, 5
      %v1191 = vsel %vm597, %v1189, %v1190
      %v1192 = vrot.slane %v1190, 4
      %v1193 = vrot.slane %v1118, 5
      %v1194 = vsel %vm597, %v1192, %v1193
      %v1195 = vrot.slane %v1119, 5
      %v1196 = vrot.slane %v1195, 4
      %v1197 = vrot.slane %v1120, 5
      %v1198 = vsel %vm597, %v1196, %v1197
      %v1199 = vrot.slane %v1197, 4
      %v1200 = vrot.slane %v1121, 5
      %v1201 = vsel %vm597, %v1199, %v1200
      %1202 = vrot.lane.b32.xlu0 %v1149, 20
      %v1203 = vpop.permute.xlu0 %1202
      %1204 = vrot.lane.b32.xlu0 %v1152, 20
      %v1205 = vpop.permute.xlu0 %1204
      %1206 = vrot.lane.b32.xlu0 %v1156, 20
      %v1207 = vpop.permute.xlu0 %1206
      %1208 = vrot.lane.b32.xlu0 %v1159, 20
      %v1209 = vpop.permute.xlu0 %1208
      %1210 = vrot.lane.b32.xlu0 %v1163, 20
      %v1211 = vpop.permute.xlu0 %1210
      %1212 = vrot.lane.b32.xlu0 %v1166, 20
      %v1213 = vpop.permute.xlu0 %1212
      %1214 = vrot.lane.b32.xlu0 %v1170, 20
      %v1215 = vpop.permute.xlu0 %1214
      %1216 = vrot.lane.b32.xlu0 %v1173, 20
      %v1217 = vpop.permute.xlu0 %1216
      %1218 = vrot.lane.b32.xlu0 %v1177, 20
      %v1219 = vpop.permute.xlu0 %1218
      %1220 = vrot.lane.b32.xlu0 %v1180, 20
      %v1221 = vpop.permute.xlu0 %1220
      %1222 = vrot.lane.b32.xlu0 %v1184, 20
      %v1223 = vpop.permute.xlu0 %1222
      %1224 = vrot.lane.b32.xlu0 %v1187, 20
      %v1225 = vpop.permute.xlu0 %1224
      %1226 = vrot.lane.b32.xlu0 %v1191, 20
      %v1227 = vpop.permute.xlu0 %1226
      %1228 = vrot.lane.b32.xlu0 %v1194, 20
      %v1229 = vpop.permute.xlu0 %1228
      %1230 = vrot.lane.b32.xlu0 %v1198, 20
      %v1231 = vpop.permute.xlu0 %1230
      %1232 = vrot.lane.b32.xlu0 %v1201, 20
      %v1233 = vpop.permute.xlu0 %1232
      %vm1250 = vcmask 191648
      %1251 = vst.msk [vmem:[#allocation2] sm:$0xf] %vm1250, %v1203
      %1252 = vst.msk [vmem:[#allocation2 + $0x4] sm:$0xf] %vm1250, %v1205
      %1253 = vst.msk [vmem:[#allocation2 + $0x8] sm:$0xf] %vm1250, %v1207
      %1254 = vst.msk [vmem:[#allocation2 + $0xc] sm:$0xf] %vm1250, %v1209
      %1255 = vst.msk [vmem:[#allocation2 + $0x10] sm:$0xf] %vm1250, %v1211
      %1256 = vst.msk [vmem:[#allocation2 + $0x14] sm:$0xf] %vm1250, %v1213
      %1257 = vst.msk [vmem:[#allocation2 + $0x18] sm:$0xf] %vm1250, %v1215
      %1258 = vst.msk [vmem:[#allocation2 + $0x1c] sm:$0xf] %vm1250, %v1217
      %1259 = vst.msk [vmem:[#allocation2 + $0x20] sm:$0xf] %vm1250, %v1219
      %1260 = vst.msk [vmem:[#allocation2 + $0x24] sm:$0xf] %vm1250, %v1221
      %1261 = vst.msk [vmem:[#allocation2 + $0x28] sm:$0xf] %vm1250, %v1223
      %1262 = vst.msk [vmem:[#allocation2 + $0x2c] sm:$0xf] %vm1250, %v1225
      %1263 = vst.msk [vmem:[#allocation2 + $0x30] sm:$0xf] %vm1250, %v1227
      %1264 = vst.msk [vmem:[#allocation2 + $0x34] sm:$0xf] %vm1250, %v1229
      %1265 = vst.msk [vmem:[#allocation2 + $0x38] sm:$0xf] %vm1250, %v1231
      %1266 = vst.msk [vmem:[#allocation2 + $0x3c] sm:$0xf] %vm1250, %v1233
      %s1267 = scalar_lea.vmem %s208, 24
      %v1268 = vld [vmem:[%s1267] sm:$0xf]
      %v1269 = vld [vmem:[%s1267 + $0x4] sm:$0xf]
      %v1270 = vld [vmem:[%s1267 + $0xc] sm:$0xf]
      %v1271 = vld [vmem:[%s1267 + $0x10] sm:$0xf]
      %v1272 = vld [vmem:[%s1267 + $0x18] sm:$0xf]
      %v1273 = vld [vmem:[%s1267 + $0x1c] sm:$0xf]
      %v1274 = vld [vmem:[%s1267 + $0x24] sm:$0xf]
      %v1275 = vld [vmem:[%s1267 + $0x28] sm:$0xf]
      %v1276 = vld [vmem:[%s1267 + $0x30] sm:$0xf]
      %v1277 = vld [vmem:[%s1267 + $0x34] sm:$0xf]
      %v1278 = vld [vmem:[%s1267 + $0x3c] sm:$0xf]
      %v1279 = vld [vmem:[%s1267 + $0x40] sm:$0xf]
      %v1280 = vld [vmem:[%s1267 + $0x48] sm:$0xf]
      %v1281 = vld [vmem:[%s1267 + $0x4c] sm:$0xf]
      %v1282 = vld [vmem:[%s1267 + $0x54] sm:$0xf]
      %v1283 = vld [vmem:[%s1267 + $0x58] sm:$0xf]
      %1300 = vrot.lane.b32.xlu0 %v1268, 24
      %v1301 = vpop.permute.xlu0 %1300
      %1302 = vrot.lane.b32.xlu0 %v1269, 24
      %v1303 = vpop.permute.xlu0 %1302
      %1304 = vrot.lane.b32.xlu0 %v1270, 24
      %v1305 = vpop.permute.xlu0 %1304
      %1306 = vrot.lane.b32.xlu0 %v1271, 24
      %v1307 = vpop.permute.xlu0 %1306
      %1308 = vrot.lane.b32.xlu0 %v1272, 24
      %v1309 = vpop.permute.xlu0 %1308
      %1310 = vrot.lane.b32.xlu0 %v1273, 24
      %v1311 = vpop.permute.xlu0 %1310
      %1312 = vrot.lane.b32.xlu0 %v1274, 24
      %v1313 = vpop.permute.xlu0 %1312
      %1314 = vrot.lane.b32.xlu0 %v1275, 24
      %v1315 = vpop.permute.xlu0 %1314
      %1316 = vrot.lane.b32.xlu0 %v1276, 24
      %v1317 = vpop.permute.xlu0 %1316
      %1318 = vrot.lane.b32.xlu0 %v1277, 24
      %v1319 = vpop.permute.xlu0 %1318
      %1320 = vrot.lane.b32.xlu0 %v1278, 24
      %v1321 = vpop.permute.xlu0 %1320
      %1322 = vrot.lane.b32.xlu0 %v1279, 24
      %v1323 = vpop.permute.xlu0 %1322
      %1324 = vrot.lane.b32.xlu0 %v1280, 24
      %v1325 = vpop.permute.xlu0 %1324
      %1326 = vrot.lane.b32.xlu0 %v1281, 24
      %v1327 = vpop.permute.xlu0 %1326
      %1328 = vrot.lane.b32.xlu0 %v1282, 24
      %v1329 = vpop.permute.xlu0 %1328
      %1330 = vrot.lane.b32.xlu0 %v1283, 24
      %v1331 = vpop.permute.xlu0 %1330
      %vm1348 = vcmask 224448
      %1349 = vst.msk [vmem:[#allocation2] sm:$0xf] %vm1348, %v1301
      %1350 = vst.msk [vmem:[#allocation2 + $0x4] sm:$0xf] %vm1348, %v1303
      %1351 = vst.msk [vmem:[#allocation2 + $0x8] sm:$0xf] %vm1348, %v1305
      %1352 = vst.msk [vmem:[#allocation2 + $0xc] sm:$0xf] %vm1348, %v1307
      %1353 = vst.msk [vmem:[#allocation2 + $0x10] sm:$0xf] %vm1348, %v1309
      %1354 = vst.msk [vmem:[#allocation2 + $0x14] sm:$0xf] %vm1348, %v1311
      %1355 = vst.msk [vmem:[#allocation2 + $0x18] sm:$0xf] %vm1348, %v1313
      %1356 = vst.msk [vmem:[#allocation2 + $0x1c] sm:$0xf] %vm1348, %v1315
      %1357 = vst.msk [vmem:[#allocation2 + $0x20] sm:$0xf] %vm1348, %v1317
      %1358 = vst.msk [vmem:[#allocation2 + $0x24] sm:$0xf] %vm1348, %v1319
      %1359 = vst.msk [vmem:[#allocation2 + $0x28] sm:$0xf] %vm1348, %v1321
      %1360 = vst.msk [vmem:[#allocation2 + $0x2c] sm:$0xf] %vm1348, %v1323
      %1361 = vst.msk [vmem:[#allocation2 + $0x30] sm:$0xf] %vm1348, %v1325
      %1362 = vst.msk [vmem:[#allocation2 + $0x34] sm:$0xf] %vm1348, %v1327
      %1363 = vst.msk [vmem:[#allocation2 + $0x38] sm:$0xf] %vm1348, %v1329
      %1364 = vst.msk [vmem:[#allocation2 + $0x3c] sm:$0xf] %vm1348, %v1331
      %v1365 = vld [vmem:[%s1267] sm:$0xf]
      %v1366 = vld [vmem:[%s1267 + $0x4] sm:$0xf]
      %v1367 = vld [vmem:[%s1267 + $0x8] sm:$0x1]
      %v1368 = vld [vmem:[%s1267 + $0xc] sm:$0xf]
      %v1369 = vld [vmem:[%s1267 + $0x10] sm:$0xf]
      %v1370 = vld [vmem:[%s1267 + $0x14] sm:$0x1]
      %v1371 = vld [vmem:[%s1267 + $0x18] sm:$0xf]
      %v1372 = vld [vmem:[%s1267 + $0x1c] sm:$0xf]
      %v1373 = vld [vmem:[%s1267 + $0x20] sm:$0x1]
      %v1374 = vld [vmem:[%s1267 + $0x24] sm:$0xf]
      %v1375 = vld [vmem:[%s1267 + $0x28] sm:$0xf]
      %v1376 = vld [vmem:[%s1267 + $0x2c] sm:$0x1]
      %v1377 = vld [vmem:[%s1267 + $0x30] sm:$0xf]
      %v1378 = vld [vmem:[%s1267 + $0x34] sm:$0xf]
      %v1379 = vld [vmem:[%s1267 + $0x38] sm:$0x1]
      %v1380 = vld [vmem:[%s1267 + $0x3c] sm:$0xf]
      %v1381 = vld [vmem:[%s1267 + $0x40] sm:$0xf]
      %v1382 = vld [vmem:[%s1267 + $0x44] sm:$0x1]
      %v1383 = vld [vmem:[%s1267 + $0x48] sm:$0xf]
      %v1384 = vld [vmem:[%s1267 + $0x4c] sm:$0xf]
      %v1385 = vld [vmem:[%s1267 + $0x50] sm:$0x1]
      %v1386 = vld [vmem:[%s1267 + $0x54] sm:$0xf]
      %v1387 = vld [vmem:[%s1267 + $0x58] sm:$0xf]
      %v1388 = vld [vmem:[%s1267 + $0x5c] sm:$0x1]
      %v1390 = vshrl.u32 %v1365, 16
      %v1392 = vrot.slane %v1390, 4
      %v1393 = vshll.u32 %v1365, 16
      %v1395 = vrot.slane %v1393, 5
      %v1396 = vor.u32 %v1392, %v1395
      %v1397 = vrot.slane %v1396, 4
      %v1399 = vshll.u32 %v1366, 16
      %v1401 = vrot.slane %v1399, 5
      %v1402 = vsel %vm289, %v1397, %v1401
      %v1403 = vshrl.u32 %v1366, 16
      %v1405 = vrot.slane %v1403, 4
      %v1406 = vor.u32 %v1405, %v1401
      %v1407 = vrot.slane %v1406, 4
      %v1409 = vshll.u32 %v1367, 16
      %v1411 = vrot.slane %v1409, 5
      %v1412 = vsel %vm289, %v1407, %v1411
      %v1414 = vshrl.u32 %v1368, 16
      %v1416 = vrot.slane %v1414, 4
      %v1417 = vshll.u32 %v1368, 16
      %v1419 = vrot.slane %v1417, 5
      %v1420 = vor.u32 %v1416, %v1419
      %v1421 = vrot.slane %v1420, 4
      %v1423 = vshll.u32 %v1369, 16
      %v1425 = vrot.slane %v1423, 5
      %v1426 = vsel %vm289, %v1421, %v1425
      %v1427 = vshrl.u32 %v1369, 16
      %v1429 = vrot.slane %v1427, 4
      %v1430 = vor.u32 %v1429, %v1425
      %v1431 = vrot.slane %v1430, 4
      %v1433 = vshll.u32 %v1370, 16
      %v1435 = vrot.slane %v1433, 5
      %v1436 = vsel %vm289, %v1431, %v1435
      %v1438 = vshrl.u32 %v1371, 16
      %v1440 = vrot.slane %v1438, 4
      %v1441 = vshll.u32 %v1371, 16
      %v1443 = vrot.slane %v1441, 5
      %v1444 = vor.u32 %v1440, %v1443
      %v1445 = vrot.slane %v1444, 4
      %v1447 = vshll.u32 %v1372, 16
      %v1449 = vrot.slane %v1447, 5
      %v1450 = vsel %vm289, %v1445, %v1449
      %v1451 = vshrl.u32 %v1372, 16
      %v1453 = vrot.slane %v1451, 4
      %v1454 = vor.u32 %v1453, %v1449
      %v1455 = vrot.slane %v1454, 4
      %v1457 = vshll.u32 %v1373, 16
      %v1459 = vrot.slane %v1457, 5
      %v1460 = vsel %vm289, %v1455, %v1459
      %v1462 = vshrl.u32 %v1374, 16
      %v1464 = vrot.slane %v1462, 4
      %v1465 = vshll.u32 %v1374, 16
      %v1467 = vrot.slane %v1465, 5
      %v1468 = vor.u32 %v1464, %v1467
      %v1469 = vrot.slane %v1468, 4
      %v1471 = vshll.u32 %v1375, 16
      %v1473 = vrot.slane %v1471, 5
      %v1474 = vsel %vm289, %v1469, %v1473
      %v1475 = vshrl.u32 %v1375, 16
      %v1477 = vrot.slane %v1475, 4
      %v1478 = vor.u32 %v1477, %v1473
      %v1479 = vrot.slane %v1478, 4
      %v1481 = vshll.u32 %v1376, 16
      %v1483 = vrot.slane %v1481, 5
      %v1484 = vsel %vm289, %v1479, %v1483
      %v1486 = vshrl.u32 %v1377, 16
      %v1488 = vrot.slane %v1486, 4
      %v1489 = vshll.u32 %v1377, 16
      %v1491 = vrot.slane %v1489, 5
      %v1492 = vor.u32 %v1488, %v1491
      %v1493 = vrot.slane %v1492, 4
      %v1495 = vshll.u32 %v1378, 16
      %v1497 = vrot.slane %v1495, 5
      %v1498 = vsel %vm289, %v1493, %v1497
      %v1499 = vshrl.u32 %v1378, 16
      %v1501 = vrot.slane %v1499, 4
      %v1502 = vor.u32 %v1501, %v1497
      %v1503 = vrot.slane %v1502, 4
      %v1505 = vshll.u32 %v1379, 16
      %v1507 = vrot.slane %v1505, 5
      %v1508 = vsel %vm289, %v1503, %v1507
      %v1510 = vshrl.u32 %v1380, 16
      %v1512 = vrot.slane %v1510, 4
      %v1513 = vshll.u32 %v1380, 16
      %v1515 = vrot.slane %v1513, 5
      %v1516 = vor.u32 %v1512, %v1515
      %v1517 = vrot.slane %v1516, 4
      %v1519 = vshll.u32 %v1381, 16
      %v1521 = vrot.slane %v1519, 5
      %v1522 = vsel %vm289, %v1517, %v1521
      %v1523 = vshrl.u32 %v1381, 16
      %v1525 = vrot.slane %v1523, 4
      %v1526 = vor.u32 %v1525, %v1521
      %v1527 = vrot.slane %v1526, 4
      %v1529 = vshll.u32 %v1382, 16
      %v1531 = vrot.slane %v1529, 5
      %v1532 = vsel %vm289, %v1527, %v1531
      %v1534 = vshrl.u32 %v1383, 16
      %v1536 = vrot.slane %v1534, 4
      %v1537 = vshll.u32 %v1383, 16
      %v1539 = vrot.slane %v1537, 5
      %v1540 = vor.u32 %v1536, %v1539
      %v1541 = vrot.slane %v1540, 4
      %v1543 = vshll.u32 %v1384, 16
      %v1545 = vrot.slane %v1543, 5
      %v1546 = vsel %vm289, %v1541, %v1545
      %v1547 = vshrl.u32 %v1384, 16
      %v1549 = vrot.slane %v1547, 4
      %v1550 = vor.u32 %v1549, %v1545
      %v1551 = vrot.slane %v1550, 4
      %v1553 = vshll.u32 %v1385, 16
      %v1555 = vrot.slane %v1553, 5
      %v1556 = vsel %vm289, %v1551, %v1555
      %v1558 = vshrl.u32 %v1386, 16
      %v1560 = vrot.slane %v1558, 4
      %v1561 = vshll.u32 %v1386, 16
      %v1563 = vrot.slane %v1561, 5
      %v1564 = vor.u32 %v1560, %v1563
      %v1565 = vrot.slane %v1564, 4
      %v1567 = vshll.u32 %v1387, 16
      %v1569 = vrot.slane %v1567, 5
      %v1570 = vsel %vm289, %v1565, %v1569
      %v1571 = vshrl.u32 %v1387, 16
      %v1573 = vrot.slane %v1571, 4
      %v1574 = vor.u32 %v1573, %v1569
      %v1575 = vrot.slane %v1574, 4
      %v1577 = vshll.u32 %v1388, 16
      %v1579 = vrot.slane %v1577, 5
      %v1580 = vsel %vm289, %v1575, %v1579
      %1581 = vrot.lane.b32.xlu0 %v1402, 28
      %v1582 = vpop.permute.xlu0 %1581
      %1583 = vrot.lane.b32.xlu0 %v1412, 28
      %v1584 = vpop.permute.xlu0 %1583
      %1585 = vrot.lane.b32.xlu0 %v1426, 28
      %v1586 = vpop.permute.xlu0 %1585
      %1587 = vrot.lane.b32.xlu0 %v1436, 28
      %v1588 = vpop.permute.xlu0 %1587
      %1589 = vrot.lane.b32.xlu0 %v1450, 28
      %v1590 = vpop.permute.xlu0 %1589
      %1591 = vrot.lane.b32.xlu0 %v1460, 28
      %v1592 = vpop.permute.xlu0 %1591
      %1593 = vrot.lane.b32.xlu0 %v1474, 28
      %v1594 = vpop.permute.xlu0 %1593
      %1595 = vrot.lane.b32.xlu0 %v1484, 28
      %v1596 = vpop.permute.xlu0 %1595
      %1597 = vrot.lane.b32.xlu0 %v1498, 28
      %v1598 = vpop.permute.xlu0 %1597
      %1599 = vrot.lane.b32.xlu0 %v1508, 28
      %v1600 = vpop.permute.xlu0 %1599
      %1601 = vrot.lane.b32.xlu0 %v1522, 28
      %v1602 = vpop.permute.xlu0 %1601
      %1603 = vrot.lane.b32.xlu0 %v1532, 28
      %v1604 = vpop.permute.xlu0 %1603
      %1605 = vrot.lane.b32.xlu0 %v1546, 28
      %v1606 = vpop.permute.xlu0 %1605
      %1607 = vrot.lane.b32.xlu0 %v1556, 28
      %v1608 = vpop.permute.xlu0 %1607
      %1609 = vrot.lane.b32.xlu0 %v1570, 28
      %v1610 = vpop.permute.xlu0 %1609
      %1611 = vrot.lane.b32.xlu0 %v1580, 28
      %v1612 = vpop.permute.xlu0 %1611
      %vm1629 = vcmask 257248
      %1630 = vst.msk [vmem:[#allocation2] sm:$0xf] %vm1629, %v1582
      %1631 = vst.msk [vmem:[#allocation2 + $0x4] sm:$0xf] %vm1629, %v1584
      %1632 = vst.msk [vmem:[#allocation2 + $0x8] sm:$0xf] %vm1629, %v1586
      %1633 = vst.msk [vmem:[#allocation2 + $0xc] sm:$0xf] %vm1629, %v1588
      %1634 = vst.msk [vmem:[#allocation2 + $0x10] sm:$0xf] %vm1629, %v1590
      %1635 = vst.msk [vmem:[#allocation2 + $0x14] sm:$0xf] %vm1629, %v1592
      %1636 = vst.msk [vmem:[#allocation2 + $0x18] sm:$0xf] %vm1629, %v1594
      %1637 = vst.msk [vmem:[#allocation2 + $0x1c] sm:$0xf] %vm1629, %v1596
      %1638 = vst.msk [vmem:[#allocation2 + $0x20] sm:$0xf] %vm1629, %v1598
      %1639 = vst.msk [vmem:[#allocation2 + $0x24] sm:$0xf] %vm1629, %v1600
      %1640 = vst.msk [vmem:[#allocation2 + $0x28] sm:$0xf] %vm1629, %v1602
      %1641 = vst.msk [vmem:[#allocation2 + $0x2c] sm:$0xf] %vm1629, %v1604
      %1642 = vst.msk [vmem:[#allocation2 + $0x30] sm:$0xf] %vm1629, %v1606
      %1643 = vst.msk [vmem:[#allocation2 + $0x34] sm:$0xf] %vm1629, %v1608
      %1644 = vst.msk [vmem:[#allocation2 + $0x38] sm:$0xf] %vm1629, %v1610
      %1645 = vst.msk [vmem:[#allocation2 + $0x3c] sm:$0xf] %vm1629, %v1612
      %v1646 = vld [vmem:[%s1267] sm:$0xe]
      %v1647 = vld [vmem:[%s1267 + $0x4] sm:$0xf]
      %v1648 = vld [vmem:[%s1267 + $0x8] sm:$0x1]
      %v1649 = vld [vmem:[%s1267 + $0xc] sm:$0xe]
      %v1650 = vld [vmem:[%s1267 + $0x10] sm:$0xf]
      %v1651 = vld [vmem:[%s1267 + $0x14] sm:$0x1]
      %v1652 = vld [vmem:[%s1267 + $0x18] sm:$0xe]
      %v1653 = vld [vmem:[%s1267 + $0x1c] sm:$0xf]
      %v1654 = vld [vmem:[%s1267 + $0x20] sm:$0x1]
      %v1655 = vld [vmem:[%s1267 + $0x24] sm:$0xe]
      %v1656 = vld [vmem:[%s1267 + $0x28] sm:$0xf]
      %v1657 = vld [vmem:[%s1267 + $0x2c] sm:$0x1]
      %v1658 = vld [vmem:[%s1267 + $0x30] sm:$0xe]
      %v1659 = vld [vmem:[%s1267 + $0x34] sm:$0xf]
      %v1660 = vld [vmem:[%s1267 + $0x38] sm:$0x1]
      %v1661 = vld [vmem:[%s1267 + $0x3c] sm:$0xe]
      %v1662 = vld [vmem:[%s1267 + $0x40] sm:$0xf]
      %v1663 = vld [vmem:[%s1267 + $0x44] sm:$0x1]
      %v1664 = vld [vmem:[%s1267 + $0x48] sm:$0xe]
      %v1665 = vld [vmem:[%s1267 + $0x4c] sm:$0xf]
      %v1666 = vld [vmem:[%s1267 + $0x50] sm:$0x1]
      %v1667 = vld [vmem:[%s1267 + $0x54] sm:$0xe]
      %v1668 = vld [vmem:[%s1267 + $0x58] sm:$0xf]
      %v1669 = vld [vmem:[%s1267 + $0x5c] sm:$0x1]
      %v1694 = vrot.slane %v1646, 5
      %v1695 = vrot.slane %v1694, 4
      %v1696 = vrot.slane %v1647, 5
      %v1697 = vsel %vm597, %v1695, %v1696
      %v1698 = vrot.slane %v1696, 4
      %v1699 = vrot.slane %v1648, 5
      %v1700 = vsel %vm597, %v1698, %v1699
      %v1701 = vrot.slane %v1649, 5
      %v1702 = vrot.slane %v1701, 4
      %v1703 = vrot.slane %v1650, 5
      %v1704 = vsel %vm597, %v1702, %v1703
      %v1705 = vrot.slane %v1703, 4
      %v1706 = vrot.slane %v1651, 5
      %v1707 = vsel %vm597, %v1705, %v1706
      %v1708 = vrot.slane %v1652, 5
      %v1709 = vrot.slane %v1708, 4
      %v1710 = vrot.slane %v1653, 5
      %v1711 = vsel %vm597, %v1709, %v1710
      %v1712 = vrot.slane %v1710, 4
      %v1713 = vrot.slane %v1654, 5
      %v1714 = vsel %vm597, %v1712, %v1713
      %v1715 = vrot.slane %v1655, 5
      %v1716 = vrot.slane %v1715, 4
      %v1717 = vrot.slane %v1656, 5
      %v1718 = vsel %vm597, %v1716, %v1717
      %v1719 = vrot.slane %v1717, 4
      %v1720 = vrot.slane %v1657, 5
      %v1721 = vsel %vm597, %v1719, %v1720
      %v1722 = vrot.slane %v1658, 5
      %v1723 = vrot.slane %v1722, 4
      %v1724 = vrot.slane %v1659, 5
      %v1725 = vsel %vm597, %v1723, %v1724
      %v1726 = vrot.slane %v1724, 4
      %v1727 = vrot.slane %v1660, 5
      %v1728 = vsel %vm597, %v1726, %v1727
      %v1729 = vrot.slane %v1661, 5
      %v1730 = vrot.slane %v1729, 4
      %v1731 = vrot.slane %v1662, 5
      %v1732 = vsel %vm597, %v1730, %v1731
      %v1733 = vrot.slane %v1731, 4
      %v1734 = vrot.slane %v1663, 5
      %v1735 = vsel %vm597, %v1733, %v1734
      %v1736 = vrot.slane %v1664, 5
      %v1737 = vrot.slane %v1736, 4
      %v1738 = vrot.slane %v1665, 5
      %v1739 = vsel %vm597, %v1737, %v1738
      %v1740 = vrot.slane %v1738, 4
      %v1741 = vrot.slane %v1666, 5
      %v1742 = vsel %vm597, %v1740, %v1741
      %v1743 = vrot.slane %v1667, 5
      %v1744 = vrot.slane %v1743, 4
      %v1745 = vrot.slane %v1668, 5
      %v1746 = vsel %vm597, %v1744, %v1745
      %v1747 = vrot.slane %v1745, 4
      %v1748 = vrot.slane %v1669, 5
      %v1749 = vsel %vm597, %v1747, %v1748
      %1750 = vrot.lane.b32.xlu0 %v1697, 32
      %v1751 = vpop.permute.xlu0 %1750
      %1752 = vrot.lane.b32.xlu0 %v1700, 32
      %v1753 = vpop.permute.xlu0 %1752
      %1754 = vrot.lane.b32.xlu0 %v1704, 32
      %v1755 = vpop.permute.xlu0 %1754
      %1756 = vrot.lane.b32.xlu0 %v1707, 32
      %v1757 = vpop.permute.xlu0 %1756
      %1758 = vrot.lane.b32.xlu0 %v1711, 32
      %v1759 = vpop.permute.xlu0 %1758
      %1760 = vrot.lane.b32.xlu0 %v1714, 32
      %v1761 = vpop.permute.xlu0 %1760
      %1762 = vrot.lane.b32.xlu0 %v1718, 32
      %v1763 = vpop.permute.xlu0 %1762
      %1764 = vrot.lane.b32.xlu0 %v1721, 32
      %v1765 = vpop.permute.xlu0 %1764
      %1766 = vrot.lane.b32.xlu0 %v1725, 32
      %v1767 = vpop.permute.xlu0 %1766
      %1768 = vrot.lane.b32.xlu0 %v1728, 32
      %v1769 = vpop.permute.xlu0 %1768
      %1770 = vrot.lane.b32.xlu0 %v1732, 32
      %v1771 = vpop.permute.xlu0 %1770
      %1772 = vrot.lane.b32.xlu0 %v1735, 32
      %v1773 = vpop.permute.xlu0 %1772
      %1774 = vrot.lane.b32.xlu0 %v1739, 32
      %v1775 = vpop.permute.xlu0 %1774
      %1776 = vrot.lane.b32.xlu0 %v1742, 32
      %v1777 = vpop.permute.xlu0 %1776
      %1778 = vrot.lane.b32.xlu0 %v1746, 32
      %v1779 = vpop.permute.xlu0 %1778
      %1780 = vrot.lane.b32.xlu0 %v1749, 32
      %v1781 = vpop.permute.xlu0 %1780
      %vm1798 = vcmask 290048
      %1799 = vst.msk [vmem:[#allocation2] sm:$0xf] %vm1798, %v1751
      %1800 = vst.msk [vmem:[#allocation2 + $0x4] sm:$0xf] %vm1798, %v1753
      %1801 = vst.msk [vmem:[#allocation2 + $0x8] sm:$0xf] %vm1798, %v1755
      %1802 = vst.msk [vmem:[#allocation2 + $0xc] sm:$0xf] %vm1798, %v1757
      %1803 = vst.msk [vmem:[#allocation2 + $0x10] sm:$0xf] %vm1798, %v1759
      %1804 = vst.msk [vmem:[#allocation2 + $0x14] sm:$0xf] %vm1798, %v1761
      %1805 = vst.msk [vmem:[#allocation2 + $0x18] sm:$0xf] %vm1798, %v1763
      %1806 = vst.msk [vmem:[#allocation2 + $0x1c] sm:$0xf] %vm1798, %v1765
      %1807 = vst.msk [vmem:[#allocation2 + $0x20] sm:$0xf] %vm1798, %v1767
      %1808 = vst.msk [vmem:[#allocation2 + $0x24] sm:$0xf] %vm1798, %v1769
      %1809 = vst.msk [vmem:[#allocation2 + $0x28] sm:$0xf] %vm1798, %v1771
      %1810 = vst.msk [vmem:[#allocation2 + $0x2c] sm:$0xf] %vm1798, %v1773
      %1811 = vst.msk [vmem:[#allocation2 + $0x30] sm:$0xf] %vm1798, %v1775
      %1812 = vst.msk [vmem:[#allocation2 + $0x34] sm:$0xf] %vm1798, %v1777
      %1813 = vst.msk [vmem:[#allocation2 + $0x38] sm:$0xf] %vm1798, %v1779
      %1814 = vst.msk [vmem:[#allocation2 + $0x3c] sm:$0xf] %vm1798, %v1781
      %v1815 = vld [vmem:[#allocation2] sm:$0xf]
      %v1816 = vld [vmem:[#allocation2 + $0x4] sm:$0xf]
      %v1817 = vld [vmem:[#allocation2 + $0x8] sm:$0xf]
      %v1818 = vld [vmem:[#allocation2 + $0xc] sm:$0xf]
      %v1819 = vld [vmem:[#allocation2 + $0x10] sm:$0xf]
      %v1820 = vld [vmem:[#allocation2 + $0x14] sm:$0xf]
      %v1821 = vld [vmem:[#allocation2 + $0x18] sm:$0xf]
      %v1822 = vld [vmem:[#allocation2 + $0x1c] sm:$0xf]
      %v1823 = vld [vmem:[#allocation2 + $0x20] sm:$0xf]
      %v1824 = vld [vmem:[#allocation2 + $0x24] sm:$0xf]
      %v1825 = vld [vmem:[#allocation2 + $0x28] sm:$0xf]
      %v1826 = vld [vmem:[#allocation2 + $0x2c] sm:$0xf]
      %v1827 = vld [vmem:[#allocation2 + $0x30] sm:$0xf]
      %v1828 = vld [vmem:[#allocation2 + $0x34] sm:$0xf]
      %v1829 = vld [vmem:[#allocation2 + $0x38] sm:$0xf]
      %v1830 = vld [vmem:[#allocation2 + $0x3c] sm:$0xf]
      %v1831 = vld [vmem:[%s1] sm:$0xf]
      %v1832 = vld [vmem:[%s1 + $0x4] sm:$0xf]
      %v1833 = vld [vmem:[%s1 + $0x8] sm:$0xf]
      %v1834 = vld [vmem:[%s1 + $0xc] sm:$0xf]
      %v1835 = vld [vmem:[%s1 + $0x10] sm:$0x3]
      %v1852 = vunpack.c.l.b16 %v1815
      %v1853 = vunpack.c.l.b16 %v1816
      %v1854 = vunpack.c.l.b16 %v1817
      %v1855 = vunpack.c.l.b16 %v1818
      %v1856 = vunpack.c.l.b16 %v1819
      %v1857 = vunpack.c.l.b16 %v1820
      %v1858 = vunpack.c.l.b16 %v1821
      %v1859 = vunpack.c.l.b16 %v1822
      %v1860 = vunpack.c.l.b16 %v1823
      %v1861 = vunpack.c.l.b16 %v1824
      %v1862 = vunpack.c.l.b16 %v1825
      %v1863 = vunpack.c.l.b16 %v1826
      %v1864 = vunpack.c.l.b16 %v1827
      %v1865 = vunpack.c.l.b16 %v1828
      %v1866 = vunpack.c.l.b16 %v1829
      %v1867 = vunpack.c.l.b16 %v1830
      %v1868 = vpack.c.b16 %v1853, %v1852
      %v1869 = vpack.c.b16 %v1855, %v1854
      %v1870 = vpack.c.b16 %v1857, %v1856
      %v1871 = vpack.c.b16 %v1859, %v1858
      %v1872 = vpack.c.b16 %v1861, %v1860
      %v1873 = vpack.c.b16 %v1863, %v1862
      %v1874 = vpack.c.b16 %v1865, %v1864
      %v1875 = vpack.c.b16 %v1867, %v1866
      %v1881 = vunpack.c.l.b16 %v1831
      %v1882 = vunpack.c.l.b16 %v1832
      %v1883 = vunpack.c.l.b16 %v1833
      %v1884 = vunpack.c.l.b16 %v1834
      %v1885 = vunpack.c.l.b16 %v1835
      %v1886 = vpack.c.b16 %v1882, %v1881
      %v1887 = vpack.c.b16 %v1884, %v1883
      %v1888 = vpack.c.b16 %v1885, %v1885
      %vm1891 = vcmask 293888
      %v1893 = vsel %vm1891, %v1868, 0
      %v1896 = vsel %vm1891, %v1869, 0
      %v1899 = vsel %vm1891, %v1870, 0
      %v1902 = vsel %vm1891, %v1871, 0
      %v1905 = vsel %vm1891, %v1872, 0
      %v1908 = vsel %vm1891, %v1873, 0
      %v1911 = vsel %vm1891, %v1874, 0
      %v1914 = vsel %vm1891, %v1875, 0
      %vm1916 = vcmask 1041408
      %v1918 = vsel %vm1916, %v1888, 0
      %1920 = vmatprep.subr.bf16.mxu0 0
      %1921 = vmatpush1.bf16.msra.mxu0 0
      %1922 = vmatprep.subr.bf16.mxu0 0
      %1923 = vmatpush1.bf16.msra.mxu0 0
      %1924 = vmatprep.subr.bf16.mxu0 0
      %1925 = vmatpush1.bf16.msra.mxu0 0
      %1926 = vmatprep.subr.bf16.mxu0 0
      %1927 = vmatpush1.bf16.msra.mxu0 0
      %1928 = vmatprep.subr.bf16.mxu0 0
      %1929 = vmatpush1.bf16.msra.mxu0 0
      %1930 = vmatprep.subr.bf16.mxu0 0
      %1931 = vmatpush1.bf16.msra.mxu0 %v1918
      %1932 = vmatprep.subr.bf16.mxu0 0
      %1933 = vmatpush1.bf16.msra.mxu0 %v1887
      %1934 = vmatprep.subr.bf16.mxu0 0
      %1935 = vmatpush1.bf16.msra.mxu0 %v1886
      %1936 = vmatprep.subr.bf16.mxu0 0
      %1937 = vmatpush2.bf16.msra.mxu0 0
      %1938 = vmatprep.subr.bf16.mxu0 0
      %1939 = vmatpush2.bf16.msra.mxu0 0
      %1940 = vmatprep.subr.bf16.mxu0 0
      %1941 = vmatpush2.bf16.msra.mxu0 0
      %1942 = vmatprep.subr.bf16.mxu0 0
      %1943 = vmatpush2.bf16.msra.mxu0 0
      %1944 = vmatprep.subr.bf16.mxu0 0
      %1945 = vmatpush2.bf16.msra.mxu0 0
      %1946 = vmatprep.subr.bf16.mxu0 0
      %1947 = vmatpush2.bf16.msra.mxu0 0
      %1948 = vmatprep.subr.bf16.mxu0 0
      %1949 = vmatpush2.bf16.msra.mxu0 0
      %1950 = vmatprep.subr.bf16.mxu0 0
      %1951 = vmatpush2.bf16.msra.mxu0 0
      %1952 = vmatprep.mubr.bf16.mxu0 0
      %1953 = vmatmul.mubr.bf16.gmra.mxu0 %v1893
      %v1954 = vpop.f32.mrf.mxu0
      %v1955 = vadd.f32 0.0, %v1954
      %v1956 = vpop.f32.mrf.mxu0
      %v1957 = vpop.f32.mrf.mxu0
      %v1958 = vadd.f32 0.0, %v1957
      %v1959 = vpop.f32.mrf.mxu0
      %1960 = vmatprep.mubr.bf16.mxu0 0
      %1961 = vmatmul.mubr.bf16.gmra.mxu0 %v1896
      %v1962 = vpop.f32.mrf.mxu0
      %v1963 = vadd.f32 0.0, %v1962
      %v1964 = vpop.f32.mrf.mxu0
      %v1965 = vpop.f32.mrf.mxu0
      %v1966 = vadd.f32 0.0, %v1965
      %v1967 = vpop.f32.mrf.mxu0
      %1968 = vmatprep.mubr.bf16.mxu0 0
      %1969 = vmatmul.mubr.bf16.gmra.mxu0 %v1899
      %v1970 = vpop.f32.mrf.mxu0
      %v1971 = vadd.f32 0.0, %v1970
      %v1972 = vpop.f32.mrf.mxu0
      %v1973 = vpop.f32.mrf.mxu0
      %v1974 = vadd.f32 0.0, %v1973
      %v1975 = vpop.f32.mrf.mxu0
      %1976 = vmatprep.mubr.bf16.mxu0 0
      %1977 = vmatmul.mubr.bf16.gmra.mxu0 %v1902
      %v1978 = vpop.f32.mrf.mxu0
      %v1979 = vadd.f32 0.0, %v1978
      %v1980 = vpop.f32.mrf.mxu0
      %v1981 = vpop.f32.mrf.mxu0
      %v1982 = vadd.f32 0.0, %v1981
      %v1983 = vpop.f32.mrf.mxu0
      %1984 = vmatprep.mubr.bf16.mxu0 0
      %1985 = vmatmul.mubr.bf16.gmra.mxu0 %v1905
      %v1986 = vpop.f32.mrf.mxu0
      %v1987 = vadd.f32 0.0, %v1986
      %v1988 = vpop.f32.mrf.mxu0
      %v1989 = vpop.f32.mrf.mxu0
      %v1990 = vadd.f32 0.0, %v1989
      %v1991 = vpop.f32.mrf.mxu0
      %1992 = vmatprep.mubr.bf16.mxu0 0
      %1993 = vmatmul.mubr.bf16.gmra.mxu0 %v1908
      %v1994 = vpop.f32.mrf.mxu0
      %v1995 = vadd.f32 0.0, %v1994
      %v1996 = vpop.f32.mrf.mxu0
      %v1997 = vpop.f32.mrf.mxu0
      %v1998 = vadd.f32 0.0, %v1997
      %v1999 = vpop.f32.mrf.mxu0
      %2000 = vmatprep.mubr.bf16.mxu0 0
      %2001 = vmatmul.mubr.bf16.gmra.mxu0 %v1911
      %v2002 = vpop.f32.mrf.mxu0
      %v2003 = vadd.f32 0.0, %v2002
      %v2004 = vpop.f32.mrf.mxu0
      %v2005 = vpop.f32.mrf.mxu0
      %v2006 = vadd.f32 0.0, %v2005
      %v2007 = vpop.f32.mrf.mxu0
      %2008 = vmatprep.mubr.bf16.mxu0 0
      %2009 = vmatmul.mubr.bf16.gmra.mxu0 %v1914
      %v2010 = vpop.f32.mrf.mxu0
      %v2011 = vadd.f32 0.0, %v2010
      %v2012 = vpop.f32.mrf.mxu0
      %v2013 = vpop.f32.mrf.mxu0
      %v2014 = vadd.f32 0.0, %v2013
      %v2015 = vpop.f32.mrf.mxu0
      %2016 = vdwg.mxu0
      %v2017 = vpack.c.bf16 %v1958, %v1955
      %v2018 = vpack.c.bf16 %v1966, %v1963
      %v2019 = vpack.c.bf16 %v1974, %v1971
      %v2020 = vpack.c.bf16 %v1982, %v1979
      %v2021 = vpack.c.bf16 %v1990, %v1987
      %v2022 = vpack.c.bf16 %v1998, %v1995
      %v2023 = vpack.c.bf16 %v2006, %v2003
      %v2024 = vpack.c.bf16 %v2014, %v2011
      %v2033 = vunpack.c.l.b16 %v2017
      %v2034 = vunpack.c.h.b16 %v2017
      %v2035 = vunpack.c.l.b16 %v2018
      %v2036 = vunpack.c.h.b16 %v2018
      %v2037 = vunpack.c.l.b16 %v2019
      %v2038 = vunpack.c.h.b16 %v2019
      %v2039 = vunpack.c.l.b16 %v2020
      %v2040 = vunpack.c.h.b16 %v2020
      %v2041 = vunpack.c.l.b16 %v2021
      %v2042 = vunpack.c.h.b16 %v2021
      %v2043 = vunpack.c.l.b16 %v2022
      %v2044 = vunpack.c.h.b16 %v2022
      %v2045 = vunpack.c.l.b16 %v2023
      %v2046 = vunpack.c.h.b16 %v2023
      %v2047 = vunpack.c.l.b16 %v2024
      %v2048 = vunpack.c.h.b16 %v2024
      %v2049 = vpack.c.b16 %v2033, %v2033
      %v2050 = vpack.c.b16 %v2034, %v2034
      %v2051 = vpack.c.b16 %v2035, %v2035
      %v2052 = vpack.c.b16 %v2036, %v2036
      %v2053 = vpack.c.b16 %v2037, %v2037
      %v2054 = vpack.c.b16 %v2038, %v2038
      %v2055 = vpack.c.b16 %v2039, %v2039
      %v2056 = vpack.c.b16 %v2040, %v2040
      %v2057 = vpack.c.b16 %v2041, %v2041
      %v2058 = vpack.c.b16 %v2042, %v2042
      %v2059 = vpack.c.b16 %v2043, %v2043
      %v2060 = vpack.c.b16 %v2044, %v2044
      %v2061 = vpack.c.b16 %v2045, %v2045
      %v2062 = vpack.c.b16 %v2046, %v2046
      %v2063 = vpack.c.b16 %v2047, %v2047
      %v2064 = vpack.c.b16 %v2048, %v2048
      %2081 = vst [vmem:[%s219] sm:$0xf] %v2049
      %2082 = vst [vmem:[%s219 + $0x4] sm:$0xf] %v2050
      %2083 = vst [vmem:[%s219 + $0x8] sm:$0xf] %v2051
      %2084 = vst [vmem:[%s219 + $0xc] sm:$0xf] %v2052
      %2085 = vst [vmem:[%s219 + $0x10] sm:$0xf] %v2053
      %2086 = vst [vmem:[%s219 + $0x14] sm:$0xf] %v2054
      %2087 = vst [vmem:[%s219 + $0x18] sm:$0xf] %v2055
      %2088 = vst [vmem:[%s219 + $0x1c] sm:$0xf] %v2056
      %2089 = vst [vmem:[%s219 + $0x20] sm:$0xf] %v2057
      %2090 = vst [vmem:[%s219 + $0x24] sm:$0xf] %v2058
      %2091 = vst [vmem:[%s219 + $0x28] sm:$0xf] %v2059
      %2092 = vst [vmem:[%s219 + $0x2c] sm:$0xf] %v2060
      %2093 = vst [vmem:[%s219 + $0x30] sm:$0xf] %v2061
      %2094 = vst [vmem:[%s219 + $0x34] sm:$0xf] %v2062
      %2095 = vst [vmem:[%s219 + $0x38] sm:$0xf] %v2063
      %2096 = vst [vmem:[%s219 + $0x3c] sm:$0xf] %v2064
      %v2097 = vunpack.c.l.bf16 %v2017
      %v2098 = vunpack.c.h.bf16 %v2017
      %v2099 = vunpack.c.l.bf16 %v2018
      %v2100 = vunpack.c.h.bf16 %v2018
      %v2101 = vunpack.c.l.bf16 %v2019
      %v2102 = vunpack.c.h.bf16 %v2019
      %v2103 = vunpack.c.l.bf16 %v2020
      %v2104 = vunpack.c.h.bf16 %v2020
      %v2105 = vunpack.c.l.bf16 %v2021
      %v2106 = vunpack.c.h.bf16 %v2021
      %v2107 = vunpack.c.l.bf16 %v2022
      %v2108 = vunpack.c.h.bf16 %v2022
      %v2109 = vunpack.c.l.bf16 %v2023
      %v2110 = vunpack.c.h.bf16 %v2023
      %v2111 = vunpack.c.l.bf16 %v2024
      %v2112 = vunpack.c.h.bf16 %v2024
      %v2113 = vadd.f32 %v2097, %v2098
      %v2114 = vadd.f32 %v2113, %v2099
      %v2115 = vadd.f32 %v2114, %v2100
      %v2116 = vadd.f32 %v2115, %v2101
      %v2117 = vadd.f32 %v2116, %v2102
      %v2118 = vadd.f32 %v2117, %v2103
      %v2119 = vadd.f32 %v2118, %v2104
      %v2120 = vadd.f32 %v2119, %v2105
      %v2121 = vadd.f32 %v2120, %v2106
      %v2122 = vadd.f32 %v2121, %v2107
      %v2123 = vadd.f32 %v2122, %v2108
      %v2124 = vadd.f32 %v2123, %v2109
      %v2125 = vadd.f32 %v2124, %v2110
      %v2126 = vadd.f32 %v2125, %v2111
      %v2127 = vadd.f32 %v2126, %v2112
      %v2128 = vrot.slane %v2127, 4
      %v2129 = vadd.f32 %v2127, %v2128
      %v2130 = vrot.slane %v2129, 2
      %v2131 = vadd.f32 %v2129, %v2130
      %v2132 = vrot.slane %v2131, 1
      %v2133 = vadd.f32 %v2131, %v2132
      %v2134 = vmul.f32 %v2097, %v2097
      %v2135 = vmul.f32 %v2098, %v2098
      %v2136 = vmul.f32 %v2099, %v2099
      %v2137 = vmul.f32 %v2100, %v2100
      %v2138 = vmul.f32 %v2101, %v2101
      %v2139 = vmul.f32 %v2102, %v2102
      %v2140 = vmul.f32 %v2103, %v2103
      %v2141 = vmul.f32 %v2104, %v2104
      %v2142 = vmul.f32 %v2105, %v2105
      %v2143 = vmul.f32 %v2106, %v2106
      %v2144 = vmul.f32 %v2107, %v2107
      %v2145 = vmul.f32 %v2108, %v2108
      %v2146 = vmul.f32 %v2109, %v2109
      %v2147 = vmul.f32 %v2110, %v2110
      %v2148 = vmul.f32 %v2111, %v2111
      %v2149 = vmul.f32 %v2112, %v2112
      %v2150 = vadd.f32 %v2134, %v2135
      %v2151 = vadd.f32 %v2150, %v2136
      %v2152 = vadd.f32 %v2151, %v2137
      %v2153 = vadd.f32 %v2152, %v2138
      %v2154 = vadd.f32 %v2153, %v2139
      %v2155 = vadd.f32 %v2154, %v2140
      %v2156 = vadd.f32 %v2155, %v2141
      %v2157 = vadd.f32 %v2156, %v2142
      %v2158 = vadd.f32 %v2157, %v2143
      %v2159 = vadd.f32 %v2158, %v2144
      %v2160 = vadd.f32 %v2159, %v2145
      %v2161 = vadd.f32 %v2160, %v2146
      %v2162 = vadd.f32 %v2161, %v2147
      %v2163 = vadd.f32 %v2162, %v2148
      %v2164 = vadd.f32 %v2163, %v2149
      %v2165 = vrot.slane %v2164, 4
      %v2166 = vadd.f32 %v2164, %v2165
      %v2167 = vrot.slane %v2166, 2
      %v2168 = vadd.f32 %v2166, %v2167
      %v2169 = vrot.slane %v2168, 1
      %v2170 = vadd.f32 %v2168, %v2169
      %vm2171 = vcmask 1040384
      %v2172 = vsel %vm2171, %v2133, %v2170
      %2173 = vst [vmem:[%s226] sm:$0x3] %v2172
      %s2174 = smul.u32 16, %s20
      %p2175 = scmp.lt.s32.totalorder %s19, 1
      %s2176 = scalar_select %p2175, %s19, 1
      %p2177 = scmp.lt.s32.totalorder %s2174, 31
      %s2178 = scalar_select %p2177, %s2174, 31
      %s2179 = smul.addr %s2176, 32
      %s2180 = sadd.s32 %s2178, %s2179
      %s2181 = smul.addr %s2180, 4
      %s2182 = scalar_lea.vmem %s2, %s2181
      %s2183 = smul.u32 %s19, 2
      %s2184 = sadd.s32 %s2183, %s20
      %p2185 = scmp.lt.s32.totalorder %s2184, 3
      %s2186 = scalar_select %p2185, %s2184, 3
      %s2187 = smul.addr %s2186, 2
      %s2188 = scalar_lea.vmem %s3, %s2187
      // Predicated region
      $region29: #{unit_forward.2} parent=27 // pred_check
        %p2189 = pneg %p98
      $region30: #{unit_forward.2} parent=27 // pred_check_branch
        %2191 = sbr.rel (%p2189) target = $region32
      $region31: #{unit_forward.2} parent=27 // pred_region
        %s2192 = smul.u32 16, %s20
      $region32: #{unit_forward.2} parent=27 // pred_fallthru
        _
      // Predicated region
      $region33: #{unit_forward.2} parent=27 // pred_check
        %p2193 = pneg %p128
      $region34: #{unit_forward.2} parent=27 // pred_check_branch
        %2195 = sbr.rel (%p2193) target = $region36
      $region35: #{unit_forward.2} parent=27 // pred_region
        %s2196 = smul.u32 %s19, 2
        %s2197 = sadd.s32 %s2196, %s20
      $region36: #{unit_forward.2} parent=27 // pred_fallthru
        _
    $region28: #{unit_forward.2} parent=5 // pred_fallthru
      _
    %p2198 = scmp.le.s32.totalorder 2, %s10
    // Predicated region
    $region37: #{unit_forward.2} parent=5 // pred_check
      %p2199 = pneg %p2198
    $region38: #{unit_forward.2} parent=5 // pred_check_branch
      %2201 = sbr.rel (%p2199) target = $region40
    $region39: #{unit_forward.2} parent=5 // pred_region
      %s2202 = ssub.s32 %s10, 2
      // Predicated region
      $region41: #{unit_forward.2} parent=39 // pred_check
        %p2203 = pneg %p104
      $region42: #{unit_forward.2} parent=39 // pred_check_branch
        %2205 = sbr.rel (%p2203) target = $region44
      $region43: #{unit_forward.2} parent=39 // pred_region
        %s2206 = smul.u32 16, %s22
        %p2207 = scmp.lt.s32.totalorder %s21, 1
        %s2208 = scalar_select %p2207, %s21, 1
        %p2209 = scmp.lt.s32.totalorder %s2206, 31
        %s2210 = scalar_select %p2209, %s2206, 31
        %s2211 = smul.addr %s2208, 32
        %s2212 = sadd.s32 %s2210, %s2211
        %s2213 = smul.addr %s2212, 4
        %s2214 = scalar_lea.vmem %s2, %s2213
      $region44: #{unit_forward.2} parent=39 // pred_fallthru
        _
      // Predicated region
      $region45: #{unit_forward.2} parent=39 // pred_check
        %p2215 = pneg %p134
      $region46: #{unit_forward.2} parent=39 // pred_check_branch
        %2217 = sbr.rel (%p2215) target = $region48
      $region47: #{unit_forward.2} parent=39 // pred_region
        %s2218 = smul.u32 %s21, 2
        %s2219 = sadd.s32 %s2218, %s22
        %p2220 = scmp.lt.s32.totalorder %s2219, 3
        %s2221 = scalar_select %p2220, %s2219, 3
        %s2222 = smul.addr %s2221, 2
        %s2223 = scalar_lea.vmem %s3, %s2222
      $region48: #{unit_forward.2} parent=39 // pred_fallthru
        _
    $region40: #{unit_forward.2} parent=5 // pred_fallthru
      _
  $region6: #{unit_forward.2} parent=0 // loop_footer
    %s14 = sadd.s32 1, %s10
  $region7: #{unit_forward.2} parent=0 // loop_footer_branch
    %9 = sbr.rel target = $region3
  $region8: #{unit_forward.2} parent=0 // loop_exit
    _

</llo_original>
